<compile_context>
chip_gen: v7x
topology: tpu7x:2x2x1
jax: 0.10.0
libtpu: 0.0.40
codegen_flags: <defaults>
</compile_context>

<pallas_src>
import jax
import jax.numpy as jnp
from jax.experimental import pallas as pl
from jax.experimental.pallas import tpu as pltpu

IN_DIM = 290
H1, H2, H3 = 190, 75, 20
OUT_DIM = 1
BN_EPS = 1e-5
MAX_TB = 2048  # VMEM ceiling guard (v7x has 64 MiB VMEM per TensorCore)


def _net_kernel(x_ref,
                w1_ref, b1_ref,
                w2_ref, b2_ref,
                w3_ref, b3_ref,
                w4_ref, b4_ref,
                o_ref):
    """One batch tile: (TB, 290) -> lane-dense (1, TB) output row."""
    cdt = w1_ref.dtype  # matmul operand dtype (bf16 or f32); accumulation is f32

    # Layer 1: Linear(290,190) with folded BN, then ReLU (Dropout = identity).
    h = jnp.dot(x_ref[...].astype(cdt), w1_ref[...],
                preferred_element_type=jnp.float32) + b1_ref[...]
    h = jnp.maximum(h, 0.0)                                      # (TB, 190) f32

    # Layer 2: Linear(190,75) + folded BN + ReLU.
    h = jnp.dot(h.astype(cdt), w2_ref[...],
                preferred_element_type=jnp.float32) + b2_ref[...]
    h = jnp.maximum(h, 0.0)                                      # (TB, 75) f32

    # Layer 3: Linear(75,20) + folded BN + ReLU.
    h = jnp.dot(h.astype(cdt), w3_ref[...],
                preferred_element_type=jnp.float32) + b3_ref[...]
    h = jnp.maximum(h, 0.0)                                      # (TB, 20) f32

    # Final Linear(20,1), computed as (1,20) x (TB,20)^T so the result is a
    # lane-dense (1, TB) row instead of a 1-lane-wide (TB, 1) column.
    # NOTE(perf): if the Mosaic bundle shows a per-step XLU transpose of the
    # (TB,128-padded) h tile here, fall back to jnp.dot(h, w4_col) -> (TB,1)
    # with a masked narrow store instead.
    out = jax.lax.dot_general(
        w4_ref[...], h.astype(cdt),
        dimension_numbers=(((1,), (1,)), ((), ())),
        preferred_element_type=jnp.float32,
    ) + b4_ref[...]                                              # (1, TB)
    o_ref[...] = out.astype(o_ref.dtype)


def _fold_bn(w, b, gamma, beta, mean, var):
    """Fold BatchNorm1d (running stats, eval mode) into the preceding Linear."""
    s = gamma / jnp.sqrt(var + BN_EPS)            # (out,)
    w_eff = w * s[None, :]                        # (in, out)
    b_eff = b * s + (beta - mean * s)             # (out,)
    return w_eff, b_eff


def prepare_params(params, compute_dtype=jnp.bfloat16):
    """Fold BN + cast/transpose the weights ONCE (hoist out of the call path).

    Returns a flat tuple consumed directly by net_forward.  compute_dtype is
    the MXU operand dtype (bf16 production path; float32 for parity/debug).
    """
    w1, b1 = _fold_bn(params["w1"], params["b1"], params["bn1_g"], params["bn1_b"],
                      params["bn1_m"], params["bn1_v"])
    w2, b2 = _fold_bn(params["w2"], params["b2"], params["bn2_g"], params["bn2_b"],
                      params["bn2_m"], params["bn2_v"])
    w3, b3 = _fold_bn(params["w3"], params["b3"], params["bn3_g"], params["bn3_b"],
                      params["bn3_m"], params["bn3_v"])

    w1 = w1.astype(compute_dtype)
    w2 = w2.astype(compute_dtype)
    w3 = w3.astype(compute_dtype)
    w4 = params["w4"].T.astype(compute_dtype)                       # (1, 20)
    b1 = b1.reshape(1, H1).astype(jnp.float32)
    b2 = b2.reshape(1, H2).astype(jnp.float32)
    b3 = b3.reshape(1, H3).astype(jnp.float32)
    b4 = params["b4"].reshape(1, OUT_DIM).astype(jnp.float32)       # (1, 1)

    return tuple(jax.device_put(a) for a in (w1, b1, w2, b2, w3, b3, w4, b4))


def _round_up(n, m):
    return ((n + m - 1) // m) * m


def net_forward(x, prepared, *, block_b=2048):
    """Run the Net forward pass (inference) as a batch-tiled Pallas kernel.

    x: (B, 290) float32 or bfloat16 (bf16 halves input HBM traffic; the
    in-kernel cast becomes a no-op).  `prepared` comes from prepare_params().
    Returns (B, 1) float32.
    """
    B = x.shape[0]
    w1, b1, w2, b2, w3, b3, w4, b4 = prepared

    if block_b % 128 != 0:
        raise ValueError("block_b must be a multiple of 128")
    block_b = min(block_b, MAX_TB)   # keep >=25% VMEM slack on v7x (64 MiB/TC)

    # Batch tiling (no wrapper-side padding of x):
    #  * B <= 128: one tile whose block dims equal the full array dims.
    #  * otherwise: tiles are a multiple of 128, sized so there are at least
    #    two of them (v7x megacore sharding via "parallel") but no larger than
    #    block_b (amortizes the ~0.35 us per-grid-step overhead).
    # The last tile may be partial: Pallas masks the out-of-bounds output
    # stores and the garbage tail rows of x only affect those masked lanes.
    if B <= 128:
        tb = B
    else:
        tb = min(block_b, _round_up(pl.cdiv(B, 2), 128))
    grid = (pl.cdiv(B, tb),)

    # VMEM budget: ~7 KB per tile row (f32 x double-buffered + bf16 copy +
    # f32/bf16 h1/h2/h3) plus ~0.3 MB of weights; clamp to [32 MiB, 48 MiB].
    vmem_limit = int(min(48 << 20, max(32 << 20, tb * 8 * 1024 + (4 << 20))))

    x_spec = pl.BlockSpec((tb, IN_DIM), lambda i: (i, 0))   # tiled over batch
    out_spec = pl.BlockSpec((1, tb), lambda i: (0, i))      # lane-dense row

    def _resident(a, single_buffer):
        # Full-array block, constant index map: DMA'd once, stays VMEM-resident.
        if single_buffer:
            return pl.BlockSpec(a.shape, lambda i: (0, 0),
                                pipeline_mode=pl.Buffered(1))
        return pl.BlockSpec(a.shape, lambda i: (0, 0))

    def _run(single_buffer):
        in_specs = [x_spec] + [_resident(a, single_buffer)
                               for a in (w1, b1, w2, b2, w3, b3, w4, b4)]
        return pl.pallas_call(
            _net_kernel,
            out_shape=jax.ShapeDtypeStruct((1, B), jnp.float32),
            grid_spec=pltpu.PrefetchScalarGridSpec(
                num_scalar_prefetch=0,
                grid=grid,
                in_specs=in_specs,
                out_specs=out_spec,
            ),
            compiler_params=pltpu.CompilerParams(
                dimension_semantics=("parallel",),   # batch tiles shard across cores
                vmem_limit_bytes=vmem_limit,
            ),
        )(x, w1, b1, w2, b2, w3, b3, w4, b4)

    try:
        out_row = _run(single_buffer=True)
    except Exception:
        # Fallback if this jax/Mosaic build rejects Buffered(1) on a
        # pallas_call BlockSpec; weights are ~150 KB so double-buffering them
        # is harmless.
        out_row = _run(single_buffer=False)

    return out_row.reshape(B, OUT_DIM)


def init_params(key):
    """Deterministic synthetic parameters (shapes match the PyTorch module)."""
    ks = jax.random.split(key, 20)

    def linear(kw, kb, n_in, n_out):
        bound = 1.0 / jnp.sqrt(n_in)
        # Stored as (in, out) so the kernel computes x @ W.
        w = jax.random.uniform(kw, (n_in, n_out), jnp.float32, -bound, bound)
        b = jax.random.uniform(kb, (n_out,), jnp.float32, -bound, bound)
        return w, b

    def bn(kg, kb, km, kv, n):
        # Non-trivial running stats / affine so the fold is actually exercised.
        g = jax.random.uniform(kg, (n,), jnp.float32, 0.5, 1.5)
        b = 0.1 * jax.random.normal(kb, (n,), jnp.float32)
        m = 0.1 * jax.random.normal(km, (n,), jnp.float32)
        v = jax.random.uniform(kv, (n,), jnp.float32, 0.5, 1.5)
        return g, b, m, v

    w1, b1 = linear(ks[0], ks[1], IN_DIM, H1)
    w2, b2 = linear(ks[2], ks[3], H1, H2)
    w3, b3 = linear(ks[4], ks[5], H2, H3)
    w4, b4 = linear(ks[6], ks[7], H3, OUT_DIM)
    bn1 = bn(ks[8], ks[9], ks[10], ks[11], H1)
    bn2 = bn(ks[12], ks[13], ks[14], ks[15], H2)
    bn3 = bn(ks[16], ks[17], ks[18], ks[19], H3)

    return dict(
        w1=w1, b1=b1, w2=w2, b2=b2, w3=w3, b3=b3, w4=w4, b4=b4,
        bn1_g=bn1[0], bn1_b=bn1[1], bn1_m=bn1[2], bn1_v=bn1[3],
        bn2_g=bn2[0], bn2_b=bn2[1], bn2_m=bn2[2], bn2_v=bn2[3],
        bn3_g=bn3[0], bn3_b=bn3[1], bn3_m=bn3[2], bn3_v=bn3[3],
    )


def _reference_forward(x, params, compute_dtype=jnp.bfloat16):
    """Pure-JAX reference with the same inference semantics & compute dtype."""
    hi = jax.lax.Precision.HIGHEST

    def layer(h, w, b, g, beta, m, v):
        w_eff, b_eff = _fold_bn(w, b, g, beta, m, v)
        h = jnp.dot(h.astype(compute_dtype), w_eff.astype(compute_dtype),
                    preferred_element_type=jnp.float32, precision=hi) + b_eff
        return jnp.maximum(h, 0.0)

    h = layer(x, params["w1"], params["b1"], params["bn1_g"], params["bn1_b"],
              params["bn1_m"], params["bn1_v"])
    h = layer(h, params["w2"], params["b2"], params["bn2_g"], params["bn2_b"],
              params["bn2_m"], params["bn2_v"])
    h = layer(h, params["w3"], params["b3"], params["bn3_g"], params["bn3_b"],
              params["bn3_m"], params["bn3_v"])
    out = jnp.dot(h.astype(compute_dtype), params["w4"].astype(compute_dtype),
                  preferred_element_type=jnp.float32, precision=hi) + params["b4"]
    return out


if __name__ == "__main__":
    key = jax.random.PRNGKey(0)
    k_param, k_x1, k_x2 = jax.random.split(key, 3)

    params = init_params(k_param)

    # Folded/cast weights prepared ONCE, outside the per-call path.
    prep_bf16 = prepare_params(params, jnp.bfloat16)
    prep_f32 = prepare_params(params, jnp.float32)   # parity/debug path only

    # 1) Small single-tile batch, default bf16 matmul operands.
    B1 = 8
    x1 = jax.random.normal(k_x1, (B1, IN_DIM), jnp.float32)
    out1 = jax.block_until_ready(net_forward(x1, prep_bf16))
    ref1 = _reference_forward(x1, params, jnp.bfloat16)
    assert out1.shape == (B1, OUT_DIM)
    assert jnp.allclose(out1, ref1, atol=1e-2, rtol=1e-2), "bf16 path mismatch"

    # 2) Exact f32 compute path (debug/parity).
    out1_f32 = jax.block_until_ready(net_forward(x1, prep_f32))
    ref1_f32 = _reference_forward(x1, params, jnp.float32)
    assert jnp.allclose(out1_f32, ref1_f32, atol=2e-3, rtol=2e-3), \
        "f32 path mismatch"

    # 3) Multi-tile, ragged batch: B=300 -> tb=256, grid=(2,) with a masked
    #    partial tail tile (no wrapper-side jnp.pad) and >=2 parallel tiles
    #    so both v7x TensorCores are used.
    B2 = 300
    x2 = jax.random.normal(k_x2, (B2, IN_DIM), jnp.float32)
    out2 = jax.block_until_ready(net_forward(x2, prep_bf16))
    ref2 = _reference_forward(x2, params, jnp.bfloat16)
    assert out2.shape == (B2, OUT_DIM)
    assert jnp.allclose(out2, ref2, atol=1e-2, rtol=1e-2), "tiled path mismatch"

    # TODO(synk): Dropout(p=0.1) is identity (inference mode) and BatchNorm1d
    # uses running statistics folded into the weights; training-mode BN /
    # dropout is not implemented.  An fp8 layer-1 path for v7x is a possible
    # further optimization if accuracy tolerates it.
    print("KERNEL_OK")
</pallas_src>

<mosaic_0001>
module attributes {stable_mosaic.version = 11 : i64} {
  func.func @_net_kernel(%arg0: i32, %arg1: memref<8x290xf32, #tpu.memory_space<vmem>>, %arg2: memref<290x190xbf16, #tpu.memory_space<vmem>>, %arg3: memref<1x190xf32, #tpu.memory_space<vmem>>, %arg4: memref<190x75xbf16, #tpu.memory_space<vmem>>, %arg5: memref<1x75xf32, #tpu.memory_space<vmem>>, %arg6: memref<75x20xbf16, #tpu.memory_space<vmem>>, %arg7: memref<1x20xf32, #tpu.memory_space<vmem>>, %arg8: memref<1x20xbf16, #tpu.memory_space<vmem>>, %arg9: memref<1x1xf32, #tpu.memory_space<vmem>>, %arg10: memref<1x8xf32, #tpu.memory_space<vmem>>) attributes {dimension_semantics = [#tpu.dimension_semantics<parallel>], iteration_bounds = array<i64: 1>, scalar_prefetch = 0 : i64, scratch_operands = 0 : i64, tpu.core_type = #tpu.core_type<tc>, window_params = [{transform_indices = @transform_0, window_bounds = array<i64: 8, 290>}, {pipeline_mode = #tpu.pipeline_mode<synchronous>, transform_indices = @transform_1, window_bounds = array<i64: 290, 190>}, {pipeline_mode = #tpu.pipeline_mode<synchronous>, transform_indices = @transform_2, window_bounds = array<i64: 1, 190>}, {pipeline_mode = #tpu.pipeline_mode<synchronous>, transform_indices = @transform_3, window_bounds = array<i64: 190, 75>}, {pipeline_mode = #tpu.pipeline_mode<synchronous>, transform_indices = @transform_4, window_bounds = array<i64: 1, 75>}, {pipeline_mode = #tpu.pipeline_mode<synchronous>, transform_indices = @transform_5, window_bounds = array<i64: 75, 20>}, {pipeline_mode = #tpu.pipeline_mode<synchronous>, transform_indices = @transform_6, window_bounds = array<i64: 1, 20>}, {pipeline_mode = #tpu.pipeline_mode<synchronous>, transform_indices = @transform_7, window_bounds = array<i64: 1, 20>}, {pipeline_mode = #tpu.pipeline_mode<synchronous>, transform_indices = @transform_8, window_bounds = array<i64: 1, 1>}, {transform_indices = @transform_9, window_bounds = array<i64: 1, 8>}]} {
    %c0 = arith.constant 0 : index
    %c0_0 = arith.constant 0 : index
    %0 = vector.load %arg1[%c0, %c0_0] : memref<8x290xf32, #tpu.memory_space<vmem>>, vector<8x290xf32>
    %1 = arith.truncf %0 : vector<8x290xf32> to vector<8x290xbf16>
    %c0_1 = arith.constant 0 : index
    %c0_2 = arith.constant 0 : index
    %2 = vector.load %arg2[%c0_1, %c0_2] : memref<290x190xbf16, #tpu.memory_space<vmem>>, vector<290x190xbf16>
    %cst = arith.constant dense<0.000000e+00> : vector<8x190xf32>
    %3 = tpu.matmul %1, %2, %cst {dimension_numbers = #tpu.dot_dimension_numbers<[1], [0], [0], [1], [0, 0, 1, 1], [], []>} : vector<8x290xbf16>, vector<290x190xbf16>, vector<8x190xf32> -> vector<8x190xf32>
    %c0_3 = arith.constant 0 : index
    %c0_4 = arith.constant 0 : index
    %4 = vector.load %arg3[%c0_3, %c0_4] : memref<1x190xf32, #tpu.memory_space<vmem>>, vector<1x190xf32>
    %5 = vector.broadcast %4 : vector<1x190xf32> to vector<8x190xf32>
    %6 = arith.addf %3, %5 : vector<8x190xf32>
    %cst_5 = arith.constant 0.000000e+00 : f32
    %7 = vector.broadcast %cst_5 : f32 to vector<8x190xf32>
    %8 = arith.maximumf %6, %7 : vector<8x190xf32>
    %9 = arith.truncf %8 : vector<8x190xf32> to vector<8x190xbf16>
    %c0_6 = arith.constant 0 : index
    %c0_7 = arith.constant 0 : index
    %10 = vector.load %arg4[%c0_6, %c0_7] : memref<190x75xbf16, #tpu.memory_space<vmem>>, vector<190x75xbf16>
    %cst_8 = arith.constant dense<0.000000e+00> : vector<8x75xf32>
    %11 = tpu.matmul %9, %10, %cst_8 {dimension_numbers = #tpu.dot_dimension_numbers<[1], [0], [0], [1], [0, 0, 1, 1], [], []>} : vector<8x190xbf16>, vector<190x75xbf16>, vector<8x75xf32> -> vector<8x75xf32>
    %c0_9 = arith.constant 0 : index
    %c0_10 = arith.constant 0 : index
    %12 = vector.load %arg5[%c0_9, %c0_10] : memref<1x75xf32, #tpu.memory_space<vmem>>, vector<1x75xf32>
    %13 = vector.broadcast %12 : vector<1x75xf32> to vector<8x75xf32>
    %14 = arith.addf %11, %13 : vector<8x75xf32>
    %cst_11 = arith.constant 0.000000e+00 : f32
    %15 = vector.broadcast %cst_11 : f32 to vector<8x75xf32>
    %16 = arith.maximumf %14, %15 : vector<8x75xf32>
    %17 = arith.truncf %16 : vector<8x75xf32> to vector<8x75xbf16>
    %c0_12 = arith.constant 0 : index
    %c0_13 = arith.constant 0 : index
    %18 = vector.load %arg6[%c0_12, %c0_13] : memref<75x20xbf16, #tpu.memory_space<vmem>>, vector<75x20xbf16>
    %cst_14 = arith.constant dense<0.000000e+00> : vector<8x20xf32>
    %19 = tpu.matmul %17, %18, %cst_14 {dimension_numbers = #tpu.dot_dimension_numbers<[1], [0], [0], [1], [0, 0, 1, 1], [], []>} : vector<8x75xbf16>, vector<75x20xbf16>, vector<8x20xf32> -> vector<8x20xf32>
    %c0_15 = arith.constant 0 : index
    %c0_16 = arith.constant 0 : index
    %20 = vector.load %arg7[%c0_15, %c0_16] : memref<1x20xf32, #tpu.memory_space<vmem>>, vector<1x20xf32>
    %21 = vector.broadcast %20 : vector<1x20xf32> to vector<8x20xf32>
    %22 = arith.addf %19, %21 : vector<8x20xf32>
    %cst_17 = arith.constant 0.000000e+00 : f32
    %23 = vector.broadcast %cst_17 : f32 to vector<8x20xf32>
    %24 = arith.maximumf %22, %23 : vector<8x20xf32>
    %c0_18 = arith.constant 0 : index
    %c0_19 = arith.constant 0 : index
    %25 = vector.load %arg8[%c0_18, %c0_19] : memref<1x20xbf16, #tpu.memory_space<vmem>>, vector<1x20xbf16>
    %26 = arith.truncf %24 : vector<8x20xf32> to vector<8x20xbf16>
    %cst_20 = arith.constant dense<0.000000e+00> : vector<1x8xf32>
    %27 = tpu.matmul %25, %26, %cst_20 {dimension_numbers = #tpu.dot_dimension_numbers<[1], [1], [0], [0], [0, 0, 1, 0], [], []>} : vector<1x20xbf16>, vector<8x20xbf16>, vector<1x8xf32> -> vector<1x8xf32>
    %c0_21 = arith.constant 0 : index
    %c0_22 = arith.constant 0 : index
    %28 = vector.load %arg9[%c0_21, %c0_22] : memref<1x1xf32, #tpu.memory_space<vmem>>, vector<1x1xf32>
    %29 = vector.broadcast %28 : vector<1x1xf32> to vector<1x8xf32>
    %30 = arith.addf %27, %29 : vector<1x8xf32>
    %c0_23 = arith.constant 0 : index
    %c0_24 = arith.constant 0 : index
    %31 = vector.load %arg10[%c0_23, %c0_24] : memref<1x8xf32, #tpu.memory_space<vmem>>, vector<1x8xf32>
    tpu.vector_store %arg10[%c0_23, %c0_24], %30 {strides = array<i32>} : memref<1x8xf32, #tpu.memory_space<vmem>>, vector<1x8xf32>,
    return
  }
  func.func @transform_0(%arg0: i32) -> (i32, i32) {
    %c0_i32 = arith.constant 0 : i32
    %c0_i32_0 = arith.constant 0 : i32
    return %arg0, %c0_i32 : i32, i32
  }
  func.func @transform_1(%arg0: i32) -> (i32, i32) {
    %c0_i32 = arith.constant 0 : i32
    %c0_i32_0 = arith.constant 0 : i32
    %c0_i32_1 = arith.constant 0 : i32
    return %c0_i32, %c0_i32_0 : i32, i32
  }
  func.func @transform_2(%arg0: i32) -> (i32, i32) {
    %c0_i32 = arith.constant 0 : i32
    %c0_i32_0 = arith.constant 0 : i32
    %c0_i32_1 = arith.constant 0 : i32
    return %c0_i32, %c0_i32_0 : i32, i32
  }
  func.func @transform_3(%arg0: i32) -> (i32, i32) {
    %c0_i32 = arith.constant 0 : i32
    %c0_i32_0 = arith.constant 0 : i32
    %c0_i32_1 = arith.constant 0 : i32
    return %c0_i32, %c0_i32_0 : i32, i32
  }
  func.func @transform_4(%arg0: i32) -> (i32, i32) {
    %c0_i32 = arith.constant 0 : i32
    %c0_i32_0 = arith.constant 0 : i32
    %c0_i32_1 = arith.constant 0 : i32
    return %c0_i32, %c0_i32_0 : i32, i32
  }
  func.func @transform_5(%arg0: i32) -> (i32, i32) {
    %c0_i32 = arith.constant 0 : i32
    %c0_i32_0 = arith.constant 0 : i32
    %c0_i32_1 = arith.constant 0 : i32
    return %c0_i32, %c0_i32_0 : i32, i32
  }
  func.func @transform_6(%arg0: i32) -> (i32, i32) {
    %c0_i32 = arith.constant 0 : i32
    %c0_i32_0 = arith.constant 0 : i32
    %c0_i32_1 = arith.constant 0 : i32
    return %c0_i32, %c0_i32_0 : i32, i32
  }
  func.func @transform_7(%arg0: i32) -> (i32, i32) {
    %c0_i32 = arith.constant 0 : i32
    %c0_i32_0 = arith.constant 0 : i32
    %c0_i32_1 = arith.constant 0 : i32
    return %c0_i32, %c0_i32_0 : i32, i32
  }
  func.func @transform_8(%arg0: i32) -> (i32, i32) {
    %c0_i32 = arith.constant 0 : i32
    %c0_i32_0 = arith.constant 0 : i32
    %c0_i32_1 = arith.constant 0 : i32
    return %c0_i32, %c0_i32_0 : i32, i32
  }
  func.func @transform_9(%arg0: i32) -> (i32, i32) {
    %c0_i32 = arith.constant 0 : i32
    %c0_i32_0 = arith.constant 0 : i32
    return %c0_i32, %arg0 : i32, i32
  }
}

module attributes {stable_mosaic.version = 11 : i64} {
  func.func @_net_kernel(%arg0: i32, %arg1: memref<8x290xf32, #tpu.memory_space<vmem>>, %arg2: memref<290x190xbf16, #tpu.memory_space<vmem>>, %arg3: memref<1x190xf32, #tpu.memory_space<vmem>>, %arg4: memref<190x75xbf16, #tpu.memory_space<vmem>>, %arg5: memref<1x75xf32, #tpu.memory_space<vmem>>, %arg6: memref<75x20xbf16, #tpu.memory_space<vmem>>, %arg7: memref<1x20xf32, #tpu.memory_space<vmem>>, %arg8: memref<1x20xbf16, #tpu.memory_space<vmem>>, %arg9: memref<1x1xf32, #tpu.memory_space<vmem>>, %arg10: memref<1x8xf32, #tpu.memory_space<vmem>>) attributes {dimension_semantics = [#tpu.dimension_semantics<parallel>], iteration_bounds = array<i64: 1>, scalar_prefetch = 0 : i64, scratch_operands = 0 : i64, tpu.core_type = #tpu.core_type<tc>, window_params = [{transform_indices = @transform_0, window_bounds = array<i64: 8, 290>}, {pipeline_mode = #tpu.pipeline_mode<synchronous>, transform_indices = @transform_1, window_bounds = array<i64: 290, 190>}, {pipeline_mode = #tpu.pipeline_mode<synchronous>, transform_indices = @transform_2, window_bounds = array<i64: 1, 190>}, {pipeline_mode = #tpu.pipeline_mode<synchronous>, transform_indices = @transform_3, window_bounds = array<i64: 190, 75>}, {pipeline_mode = #tpu.pipeline_mode<synchronous>, transform_indices = @transform_4, window_bounds = array<i64: 1, 75>}, {pipeline_mode = #tpu.pipeline_mode<synchronous>, transform_indices = @transform_5, window_bounds = array<i64: 75, 20>}, {pipeline_mode = #tpu.pipeline_mode<synchronous>, transform_indices = @transform_6, window_bounds = array<i64: 1, 20>}, {pipeline_mode = #tpu.pipeline_mode<synchronous>, transform_indices = @transform_7, window_bounds = array<i64: 1, 20>}, {pipeline_mode = #tpu.pipeline_mode<synchronous>, transform_indices = @transform_8, window_bounds = array<i64: 1, 1>}, {transform_indices = @transform_9, window_bounds = array<i64: 1, 8>}]} {
    %c0 = arith.constant 0 : index
    %c0_0 = arith.constant 0 : index
    %0 = vector.load %arg1[%c0, %c0_0] : memref<8x290xf32, #tpu.memory_space<vmem>>, vector<8x290xf32>
    %1 = arith.truncf %0 : vector<8x290xf32> to vector<8x290xbf16>
    %c0_1 = arith.constant 0 : index
    %c0_2 = arith.constant 0 : index
    %2 = vector.load %arg2[%c0_1, %c0_2] : memref<290x190xbf16, #tpu.memory_space<vmem>>, vector<290x190xbf16>
    %cst = arith.constant dense<0.000000e+00> : vector<8x190xf32>
    %3 = tpu.matmul %1, %2, %cst {dimension_numbers = #tpu.dot_dimension_numbers<[1], [0], [0], [1], [0, 0, 1, 1], [], []>} : vector<8x290xbf16>, vector<290x190xbf16>, vector<8x190xf32> -> vector<8x190xf32>
    %c0_3 = arith.constant 0 : index
    %c0_4 = arith.constant 0 : index
    %4 = vector.load %arg3[%c0_3, %c0_4] : memref<1x190xf32, #tpu.memory_space<vmem>>, vector<1x190xf32>
    %5 = vector.broadcast %4 : vector<1x190xf32> to vector<8x190xf32>
    %6 = arith.addf %3, %5 : vector<8x190xf32>
    %cst_5 = arith.constant 0.000000e+00 : f32
    %7 = vector.broadcast %cst_5 : f32 to vector<8x190xf32>
    %8 = arith.maximumf %6, %7 : vector<8x190xf32>
    %9 = arith.truncf %8 : vector<8x190xf32> to vector<8x190xbf16>
    %c0_6 = arith.constant 0 : index
    %c0_7 = arith.constant 0 : index
    %10 = vector.load %arg4[%c0_6, %c0_7] : memref<190x75xbf16, #tpu.memory_space<vmem>>, vector<190x75xbf16>
    %cst_8 = arith.constant dense<0.000000e+00> : vector<8x75xf32>
    %11 = tpu.matmul %9, %10, %cst_8 {dimension_numbers = #tpu.dot_dimension_numbers<[1], [0], [0], [1], [0, 0, 1, 1], [], []>} : vector<8x190xbf16>, vector<190x75xbf16>, vector<8x75xf32> -> vector<8x75xf32>
    %c0_9 = arith.constant 0 : index
    %c0_10 = arith.constant 0 : index
    %12 = vector.load %arg5[%c0_9, %c0_10] : memref<1x75xf32, #tpu.memory_space<vmem>>, vector<1x75xf32>
    %13 = vector.broadcast %12 : vector<1x75xf32> to vector<8x75xf32>
    %14 = arith.addf %11, %13 : vector<8x75xf32>
    %cst_11 = arith.constant 0.000000e+00 : f32
    %15 = vector.broadcast %cst_11 : f32 to vector<8x75xf32>
    %16 = arith.maximumf %14, %15 : vector<8x75xf32>
    %17 = arith.truncf %16 : vector<8x75xf32> to vector<8x75xbf16>
    %c0_12 = arith.constant 0 : index
    %c0_13 = arith.constant 0 : index
    %18 = vector.load %arg6[%c0_12, %c0_13] : memref<75x20xbf16, #tpu.memory_space<vmem>>, vector<75x20xbf16>
    %cst_14 = arith.constant dense<0.000000e+00> : vector<8x20xf32>
    %19 = tpu.matmul %17, %18, %cst_14 {dimension_numbers = #tpu.dot_dimension_numbers<[1], [0], [0], [1], [0, 0, 1, 1], [], []>} : vector<8x75xbf16>, vector<75x20xbf16>, vector<8x20xf32> -> vector<8x20xf32>
    %c0_15 = arith.constant 0 : index
    %c0_16 = arith.constant 0 : index
    %20 = vector.load %arg7[%c0_15, %c0_16] : memref<1x20xf32, #tpu.memory_space<vmem>>, vector<1x20xf32>
    %21 = vector.broadcast %20 : vector<1x20xf32> to vector<8x20xf32>
    %22 = arith.addf %19, %21 : vector<8x20xf32>
    %cst_17 = arith.constant 0.000000e+00 : f32
    %23 = vector.broadcast %cst_17 : f32 to vector<8x20xf32>
    %24 = arith.maximumf %22, %23 : vector<8x20xf32>
    %c0_18 = arith.constant 0 : index
    %c0_19 = arith.constant 0 : index
    %25 = vector.load %arg8[%c0_18, %c0_19] : memref<1x20xbf16, #tpu.memory_space<vmem>>, vector<1x20xbf16>
    %26 = arith.truncf %24 : vector<8x20xf32> to vector<8x20xbf16>
    %cst_20 = arith.constant dense<0.000000e+00> : vector<1x8xf32>
    %27 = tpu.matmul %25, %26, %cst_20 {dimension_numbers = #tpu.dot_dimension_numbers<[1], [1], [0], [0], [0, 0, 1, 0], [], []>} : vector<1x20xbf16>, vector<8x20xbf16>, vector<1x8xf32> -> vector<1x8xf32>
    %c0_21 = arith.constant 0 : index
    %c0_22 = arith.constant 0 : index
    %28 = vector.load %arg9[%c0_21, %c0_22] : memref<1x1xf32, #tpu.memory_space<vmem>>, vector<1x1xf32>
    %29 = vector.broadcast %28 : vector<1x1xf32> to vector<1x8xf32>
    %30 = arith.addf %27, %29 : vector<1x8xf32>
    %c0_23 = arith.constant 0 : index
    %c0_24 = arith.constant 0 : index
    %31 = vector.load %arg10[%c0_23, %c0_24] : memref<1x8xf32, #tpu.memory_space<vmem>>, vector<1x8xf32>
    tpu.vector_store %arg10[%c0_23, %c0_24], %30 {strides = array<i32>} : memref<1x8xf32, #tpu.memory_space<vmem>>, vector<1x8xf32>,
    return
  }
  func.func @transform_0(%arg0: i32) -> (i32, i32) {
    %c0_i32 = arith.constant 0 : i32
    %c0_i32_0 = arith.constant 0 : i32
    return %arg0, %c0_i32 : i32, i32
  }
  func.func @transform_1(%arg0: i32) -> (i32, i32) {
    %c0_i32 = arith.constant 0 : i32
    %c0_i32_0 = arith.constant 0 : i32
    %c0_i32_1 = arith.constant 0 : i32
    return %c0_i32, %c0_i32_0 : i32, i32
  }
  func.func @transform_2(%arg0: i32) -> (i32, i32) {
    %c0_i32 = arith.constant 0 : i32
    %c0_i32_0 = arith.constant 0 : i32
    %c0_i32_1 = arith.constant 0 : i32
    return %c0_i32, %c0_i32_0 : i32, i32
  }
  func.func @transform_3(%arg0: i32) -> (i32, i32) {
    %c0_i32 = arith.constant 0 : i32
    %c0_i32_0 = arith.constant 0 : i32
    %c0_i32_1 = arith.constant 0 : i32
    return %c0_i32, %c0_i32_0 : i32, i32
  }
  func.func @transform_4(%arg0: i32) -> (i32, i32) {
    %c0_i32 = arith.constant 0 : i32
    %c0_i32_0 = arith.constant 0 : i32
    %c0_i32_1 = arith.constant 0 : i32
    return %c0_i32, %c0_i32_0 : i32, i32
  }
  func.func @transform_5(%arg0: i32) -> (i32, i32) {
    %c0_i32 = arith.constant 0 : i32
    %c0_i32_0 = arith.constant 0 : i32
    %c0_i32_1 = arith.constant 0 : i32
    return %c0_i32, %c0_i32_0 : i32, i32
  }
  func.func @transform_6(%arg0: i32) -> (i32, i32) {
    %c0_i32 = arith.constant 0 : i32
    %c0_i32_0 = arith.constant 0 : i32
    %c0_i32_1 = arith.constant 0 : i32
    return %c0_i32, %c0_i32_0 : i32, i32
  }
  func.func @transform_7(%arg0: i32) -> (i32, i32) {
    %c0_i32 = arith.constant 0 : i32
    %c0_i32_0 = arith.constant 0 : i32
    %c0_i32_1 = arith.constant 0 : i32
    return %c0_i32, %c0_i32_0 : i32, i32
  }
  func.func @transform_8(%arg0: i32) -> (i32, i32) {
    %c0_i32 = arith.constant 0 : i32
    %c0_i32_0 = arith.constant 0 : i32
    %c0_i32_1 = arith.constant 0 : i32
    return %c0_i32, %c0_i32_0 : i32, i32
  }
  func.func @transform_9(%arg0: i32) -> (i32, i32) {
    %c0_i32 = arith.constant 0 : i32
    %c0_i32_0 = arith.constant 0 : i32
    return %c0_i32, %arg0 : i32, i32
  }
}

</mosaic_0001>

<llo_original>
// kernel: tpu_custom_call.1
$region0: #{tpu_custom_call.1}
  #allocation0 [shape = 'u32[]', space=smem, size = 0x4, offset = 0x4, fixed_abs, tag = 'smem constant byte address 0x4 - core index']
  #allocation1 [shape = 'u32[144,128]{1,0:T(1,128)}', space=vmem, size = 0x12000, scoped, tag = 'internal scratch']
  #allocation2 [shape = 'f32[1,1]{1,0:T(1,128)S(1)}', space=vmem, size = 0x200, scoped, tag = 'scoped memory for tpu_custom_call.1']
  %s0 = inlined_call_operand.vmem [shape: f32[8,290], index: 0, kind: input, shape index: {}]
  %s1 = inlined_call_operand.vmem [shape: bf16[290,190], index: 1, kind: input, shape index: {}]
  %s2 = inlined_call_operand.vmem [shape: f32[1,190], index: 2, kind: input, shape index: {}]
  %s3 = inlined_call_operand.vmem [shape: bf16[190,75], index: 3, kind: input, shape index: {}]
  %s4 = inlined_call_operand.vmem [shape: f32[1,75], index: 4, kind: input, shape index: {}]
  %s5 = inlined_call_operand.vmem [shape: bf16[75,20], index: 5, kind: input, shape index: {}]
  %s6 = inlined_call_operand.vmem [shape: f32[1,20], index: 6, kind: input, shape index: {}]
  %s7 = inlined_call_operand.vmem [shape: bf16[1,20], index: 7, kind: input, shape index: {}]
  %s8 = inlined_call_operand.<no memory space> [shape: f32[1,1], index: 8, kind: input, shape index: {}]
  %s9 = inlined_call_operand.hbm [shape: f32[1,8], index: 9, kind: output, shape index: {}]
  %s10 = sld [smem:[#allocation0]]
  $region46: #{tpu_custom_call.1} parent=0
    _
  %s12 = ssub.s32 1, %s10
  %s13 = scalar_select 0, %s12, %s10
  %v14 = vstv %s8
  %15 = vst [vmem:[#allocation2] sm:$0x1] %v14
  $region1: #{tpu_custom_call.1} parent=0
    #allocation3 [shape = 'u8[512]{0}', space=vmem, size = 0x400, scoped, tag = 'output window, operand 0, single buffered']
    #allocation4 [shape = 's32[1]{0}', space=sflag, size = 0x4, scoped, tag = 'scoped memory for tpu_custom_call.1']
    %16 = vsyncpa [#allocation4], 0
    // Predicated region
    $region2: #{tpu_custom_call.1} parent=1 // pred_check
      _
    $region3: #{tpu_custom_call.1} parent=1 // pred_check_branch
      %18 = sbr.rel (0) target = $region5
    $region4: #{tpu_custom_call.1} parent=1 // pred_region
      _
    $region5: #{tpu_custom_call.1} parent=1 // pred_fallthru
      _
    // Predicated region
    $region6: #{tpu_custom_call.1} parent=1 // pred_check
      _
    $region7: #{tpu_custom_call.1} parent=1 // pred_check_branch
      %20 = sbr.rel (0) target = $region9
    $region8: #{tpu_custom_call.1} parent=1 // pred_region
      _
    $region9: #{tpu_custom_call.1} parent=1 // pred_fallthru
      _
    // Predicated region
    $region10: #{tpu_custom_call.1} parent=1 // pred_check
      _
    $region11: #{tpu_custom_call.1} parent=1 // pred_check_branch
      %22 = sbr.rel (0) target = $region13
    $region12: #{tpu_custom_call.1} parent=1 // pred_region
      _
    $region13: #{tpu_custom_call.1} parent=1 // pred_fallthru
      _
    // Predicated region
    $region14: #{tpu_custom_call.1} parent=1 // pred_check
      _
    $region15: #{tpu_custom_call.1} parent=1 // pred_check_branch
      %24 = sbr.rel (0) target = $region17
    $region16: #{tpu_custom_call.1} parent=1 // pred_region
      _
    $region17: #{tpu_custom_call.1} parent=1 // pred_fallthru
      _
    // Predicated region
    $region18: #{tpu_custom_call.1} parent=1 // pred_check
      _
    $region19: #{tpu_custom_call.1} parent=1 // pred_check_branch
      %26 = sbr.rel (0) target = $region21
    $region20: #{tpu_custom_call.1} parent=1 // pred_region
      _
    $region21: #{tpu_custom_call.1} parent=1 // pred_fallthru
      _
    // Predicated region
    $region22: #{tpu_custom_call.1} parent=1 // pred_check
      _
    $region23: #{tpu_custom_call.1} parent=1 // pred_check_branch
      %28 = sbr.rel (0) target = $region25
    $region24: #{tpu_custom_call.1} parent=1 // pred_region
      _
    $region25: #{tpu_custom_call.1} parent=1 // pred_fallthru
      _
    // Predicated region
    $region26: #{tpu_custom_call.1} parent=1 // pred_check
      _
    $region27: #{tpu_custom_call.1} parent=1 // pred_check_branch
      %30 = sbr.rel (0) target = $region29
    $region28: #{tpu_custom_call.1} parent=1 // pred_region
      _
    $region29: #{tpu_custom_call.1} parent=1 // pred_fallthru
      _
    // Predicated region
    $region30: #{tpu_custom_call.1} parent=1 // pred_check
      _
    $region31: #{tpu_custom_call.1} parent=1 // pred_check_branch
      %32 = sbr.rel (0) target = $region33
    $region32: #{tpu_custom_call.1} parent=1 // pred_region
      _
    $region33: #{tpu_custom_call.1} parent=1 // pred_fallthru
      _
    // Predicated region
    $region34: #{tpu_custom_call.1} parent=1 // pred_check
      _
    $region35: #{tpu_custom_call.1} parent=1 // pred_check_branch
      %34 = sbr.rel (0) target = $region37
    $region36: #{tpu_custom_call.1} parent=1 // pred_region
      _
    $region37: #{tpu_custom_call.1} parent=1 // pred_fallthru
      _
    %v36 = vld [vmem:[%s0] sm:$0xff]
    %v37 = vld [vmem:[%s0 + $0x8] sm:$0xff]
    %v38 = vld [vmem:[%s0 + $0x10] sm:$0xff]
    %v39 = vpack.c.bf16 %v36, %v36
    %v40 = vpack.c.bf16 %v37, %v37
    %v41 = vpack.c.bf16 %v38, %v38
    %v42 = vld [vmem:[%s1] sm:$0xff]
    %v43 = vld [vmem:[%s1 + $0x8] sm:$0xff]
    %v44 = vld [vmem:[%s1 + $0x10] sm:$0xff]
    %v45 = vld [vmem:[%s1 + $0x18] sm:$0xff]
    %v46 = vld [vmem:[%s1 + $0x20] sm:$0xff]
    %v47 = vld [vmem:[%s1 + $0x28] sm:$0xff]
    %v48 = vld [vmem:[%s1 + $0x30] sm:$0xff]
    %v49 = vld [vmem:[%s1 + $0x38] sm:$0xff]
    %v50 = vld [vmem:[%s1 + $0x40] sm:$0xff]
    %v51 = vld [vmem:[%s1 + $0x48] sm:$0xff]
    %v52 = vld [vmem:[%s1 + $0x50] sm:$0xff]
    %v53 = vld [vmem:[%s1 + $0x58] sm:$0xff]
    %v54 = vld [vmem:[%s1 + $0x60] sm:$0xff]
    %v55 = vld [vmem:[%s1 + $0x68] sm:$0xff]
    %v56 = vld [vmem:[%s1 + $0x70] sm:$0xff]
    %v57 = vld [vmem:[%s1 + $0x78] sm:$0xff]
    %v58 = vld [vmem:[%s1 + $0x80] sm:$0xff]
    %v59 = vld [vmem:[%s1 + $0x88] sm:$0xff]
    %v60 = vld [vmem:[%s1 + $0x90] sm:$0xff]
    %v61 = vld [vmem:[%s1 + $0x98] sm:$0xff]
    %v62 = vld [vmem:[%s1 + $0xa0] sm:$0xff]
    %v63 = vld [vmem:[%s1 + $0xa8] sm:$0xff]
    %v64 = vld [vmem:[%s1 + $0xb0] sm:$0xff]
    %v65 = vld [vmem:[%s1 + $0xb8] sm:$0xff]
    %v66 = vld [vmem:[%s1 + $0xc0] sm:$0xff]
    %v67 = vld [vmem:[%s1 + $0xc8] sm:$0xff]
    %v68 = vld [vmem:[%s1 + $0xd0] sm:$0xff]
    %v69 = vld [vmem:[%s1 + $0xd8] sm:$0xff]
    %v70 = vld [vmem:[%s1 + $0xe0] sm:$0xff]
    %v71 = vld [vmem:[%s1 + $0xe8] sm:$0xff]
    %v72 = vld [vmem:[%s1 + $0xf0] sm:$0xff]
    %v73 = vld [vmem:[%s1 + $0xf8] sm:$0xff]
    %v74 = vld [vmem:[%s1 + $0x100] sm:$0xff]
    %v75 = vld [vmem:[%s1 + $0x108] sm:$0xff]
    %v76 = vld [vmem:[%s1 + $0x110] sm:$0xff]
    %v77 = vld [vmem:[%s1 + $0x118] sm:$0xff]
    %v78 = vld [vmem:[%s1 + $0x120] sm:$0x11]
    %v79 = vld [vmem:[%s2] sm:$0x3]
    %v81 = vlaneseq
    %v82 = vshrl.u32 %v81, 7
    %v83 = vsub.s32 0, %v82
    %v84 = vrot.slane %v79, %v83
    %v85 = vlaneseq
    %v86 = vshrl.u32 %v85, 7
    %v87 = vsub.s32 1, %v86
    %v88 = vrot.slane %v79, %v87
    %v128 = vunpack.c.l.b16 %v42
    %v129 = vunpack.c.h.b16 %v42
    %v130 = vunpack.c.l.b16 %v43
    %v131 = vunpack.c.h.b16 %v43
    %v132 = vunpack.c.l.b16 %v44
    %v133 = vunpack.c.h.b16 %v44
    %v134 = vunpack.c.l.b16 %v45
    %v135 = vunpack.c.h.b16 %v45
    %v136 = vunpack.c.l.b16 %v46
    %v137 = vunpack.c.h.b16 %v46
    %v138 = vunpack.c.l.b16 %v47
    %v139 = vunpack.c.h.b16 %v47
    %v140 = vunpack.c.l.b16 %v48
    %v141 = vunpack.c.h.b16 %v48
    %v142 = vunpack.c.l.b16 %v49
    %v143 = vunpack.c.h.b16 %v49
    %v144 = vunpack.c.l.b16 %v50
    %v145 = vunpack.c.h.b16 %v50
    %v146 = vunpack.c.l.b16 %v51
    %v147 = vunpack.c.h.b16 %v51
    %v148 = vunpack.c.l.b16 %v52
    %v149 = vunpack.c.h.b16 %v52
    %v150 = vunpack.c.l.b16 %v53
    %v151 = vunpack.c.h.b16 %v53
    %v152 = vunpack.c.l.b16 %v54
    %v153 = vunpack.c.h.b16 %v54
    %v154 = vunpack.c.l.b16 %v55
    %v155 = vunpack.c.h.b16 %v55
    %v156 = vunpack.c.l.b16 %v56
    %v157 = vunpack.c.h.b16 %v56
    %v158 = vunpack.c.l.b16 %v57
    %v159 = vunpack.c.h.b16 %v57
    %v160 = vunpack.c.l.b16 %v58
    %v161 = vunpack.c.h.b16 %v58
    %v162 = vunpack.c.l.b16 %v59
    %v163 = vunpack.c.h.b16 %v59
    %v164 = vunpack.c.l.b16 %v60
    %v165 = vunpack.c.h.b16 %v60
    %v166 = vunpack.c.l.b16 %v61
    %v167 = vunpack.c.h.b16 %v61
    %v168 = vunpack.c.l.b16 %v62
    %v169 = vunpack.c.h.b16 %v62
    %v170 = vunpack.c.l.b16 %v63
    %v171 = vunpack.c.h.b16 %v63
    %v172 = vunpack.c.l.b16 %v64
    %v173 = vunpack.c.h.b16 %v64
    %v174 = vunpack.c.l.b16 %v65
    %v175 = vunpack.c.h.b16 %v65
    %v176 = vunpack.c.l.b16 %v66
    %v177 = vunpack.c.h.b16 %v66
    %v178 = vunpack.c.l.b16 %v67
    %v179 = vunpack.c.h.b16 %v67
    %v180 = vunpack.c.l.b16 %v68
    %v181 = vunpack.c.h.b16 %v68
    %v182 = vunpack.c.l.b16 %v69
    %v183 = vunpack.c.h.b16 %v69
    %v184 = vunpack.c.l.b16 %v70
    %v185 = vunpack.c.h.b16 %v70
    %v186 = vunpack.c.l.b16 %v71
    %v187 = vunpack.c.h.b16 %v71
    %v188 = vunpack.c.l.b16 %v72
    %v189 = vunpack.c.h.b16 %v72
    %v190 = vunpack.c.l.b16 %v73
    %v191 = vunpack.c.h.b16 %v73
    %v192 = vunpack.c.l.b16 %v74
    %v193 = vunpack.c.h.b16 %v74
    %v194 = vunpack.c.l.b16 %v75
    %v195 = vunpack.c.h.b16 %v75
    %v196 = vunpack.c.l.b16 %v76
    %v197 = vunpack.c.h.b16 %v76
    %v198 = vunpack.c.l.b16 %v77
    %v199 = vunpack.c.h.b16 %v77
    %v200 = vunpack.c.l.b16 %v78
    %v201 = vunpack.c.h.b16 %v78
    %v202 = vpack.c.b16 %v130, %v128
    %v203 = vpack.c.b16 %v131, %v129
    %v204 = vpack.c.b16 %v134, %v132
    %v205 = vpack.c.b16 %v135, %v133
    %v206 = vpack.c.b16 %v138, %v136
    %v207 = vpack.c.b16 %v139, %v137
    %v208 = vpack.c.b16 %v142, %v140
    %v209 = vpack.c.b16 %v143, %v141
    %v210 = vpack.c.b16 %v146, %v144
    %v211 = vpack.c.b16 %v147, %v145
    %v212 = vpack.c.b16 %v150, %v148
    %v213 = vpack.c.b16 %v151, %v149
    %v214 = vpack.c.b16 %v154, %v152
    %v215 = vpack.c.b16 %v155, %v153
    %v216 = vpack.c.b16 %v158, %v156
    %v217 = vpack.c.b16 %v159, %v157
    %v218 = vpack.c.b16 %v162, %v160
    %v219 = vpack.c.b16 %v163, %v161
    %v220 = vpack.c.b16 %v166, %v164
    %v221 = vpack.c.b16 %v167, %v165
    %v222 = vpack.c.b16 %v170, %v168
    %v223 = vpack.c.b16 %v171, %v169
    %v224 = vpack.c.b16 %v174, %v172
    %v225 = vpack.c.b16 %v175, %v173
    %v226 = vpack.c.b16 %v178, %v176
    %v227 = vpack.c.b16 %v179, %v177
    %v228 = vpack.c.b16 %v182, %v180
    %v229 = vpack.c.b16 %v183, %v181
    %v230 = vpack.c.b16 %v186, %v184
    %v231 = vpack.c.b16 %v187, %v185
    %v232 = vpack.c.b16 %v190, %v188
    %v233 = vpack.c.b16 %v191, %v189
    %v234 = vpack.c.b16 %v194, %v192
    %v235 = vpack.c.b16 %v195, %v193
    %v236 = vpack.c.b16 %v198, %v196
    %v237 = vpack.c.b16 %v199, %v197
    %v238 = vpack.c.b16 %v200, %v200
    %v239 = vpack.c.b16 %v201, %v201
    %vm276 = vcmask 277504
    %v278 = vsel %vm276, %v41, 0
    %vm280 = vcmask 1040384
    %v282 = vsel %vm280, %v238, 0
    %v285 = vsel %vm280, %v239, 0
    %287 = vmatprep.subr.bf16.mxu0 %v203
    %288 = vmatpush1.bf16.msra.mxu0 %v202
    %289 = vmatprep.subr.bf16.mxu0 %v205
    %290 = vmatpush1.bf16.msra.mxu0 %v204
    %291 = vmatprep.subr.bf16.mxu0 %v207
    %292 = vmatpush1.bf16.msra.mxu0 %v206
    %293 = vmatprep.subr.bf16.mxu0 %v209
    %294 = vmatpush1.bf16.msra.mxu0 %v208
    %295 = vmatprep.subr.bf16.mxu0 %v211
    %296 = vmatpush1.bf16.msra.mxu0 %v210
    %297 = vmatprep.subr.bf16.mxu0 %v213
    %298 = vmatpush1.bf16.msra.mxu0 %v212
    %299 = vmatprep.subr.bf16.mxu0 %v215
    %300 = vmatpush1.bf16.msra.mxu0 %v214
    %301 = vmatprep.subr.bf16.mxu0 %v217
    %302 = vmatpush1.bf16.msra.mxu0 %v216
    %303 = vmatprep.subr.bf16.mxu0 %v219
    %304 = vmatpush1.bf16.msra.mxu0 %v218
    %305 = vmatprep.subr.bf16.mxu0 %v221
    %306 = vmatpush1.bf16.msra.mxu0 %v220
    %307 = vmatprep.subr.bf16.mxu0 %v223
    %308 = vmatpush1.bf16.msra.mxu0 %v222
    %309 = vmatprep.subr.bf16.mxu0 %v225
    %310 = vmatpush1.bf16.msra.mxu0 %v224
    %311 = vmatprep.subr.bf16.mxu0 %v227
    %312 = vmatpush1.bf16.msra.mxu0 %v226
    %313 = vmatprep.subr.bf16.mxu0 %v229
    %314 = vmatpush1.bf16.msra.mxu0 %v228
    %315 = vmatprep.subr.bf16.mxu0 %v231
    %316 = vmatpush1.bf16.msra.mxu0 %v230
    %317 = vmatprep.subr.bf16.mxu0 %v233
    %318 = vmatpush1.bf16.msra.mxu0 %v232
    %319 = vmatprep.mubr.bf16.mxu0 %v40
    %320 = vmatmul.mubr.bf16.gmra.mrb[0].mxu0 %v39
    %v321 = vpop.f32.mrb[0].mxu0
    %v322 = vadd.f32 %v84, %v321
    %v323 = vpop.f32.mrb[0].mxu0
    %v324 = vadd.f32 %v88, %v323
    %v325 = vpop.f32.mrb[0].mxu0
    %v326 = vpop.f32.mrb[0].mxu0
    %327 = vdwg.mxu0
    %328 = vmatprep.subr.bf16.mxu0 %v235
    %329 = vmatpush1.bf16.msra.mxu0 %v234
    %330 = vmatprep.subr.bf16.mxu0 %v237
    %331 = vmatpush1.bf16.msra.mxu0 %v236
    %332 = vmatprep.subr.bf16.mxu0 %v285
    %333 = vmatpush1.bf16.msra.mxu0 %v282
    %334 = vmatprep.subr.bf16.mxu0 0
    %335 = vmatpush1.bf16.msra.mxu0 0
    %336 = vmatprep.subr.bf16.mxu0 0
    %337 = vmatpush1.bf16.msra.mxu0 0
    %338 = vmatprep.subr.bf16.mxu0 0
    %339 = vmatpush1.bf16.msra.mxu0 0
    %340 = vmatprep.subr.bf16.mxu0 0
    %341 = vmatpush1.bf16.msra.mxu0 0
    %342 = vmatprep.subr.bf16.mxu0 0
    %343 = vmatpush1.bf16.msra.mxu0 0
    %344 = vmatprep.subr.bf16.mxu0 0
    %345 = vmatpush1.bf16.msra.mxu0 0
    %346 = vmatprep.subr.bf16.mxu0 0
    %347 = vmatpush1.bf16.msra.mxu0 0
    %348 = vmatprep.subr.bf16.mxu0 0
    %349 = vmatpush1.bf16.msra.mxu0 0
    %350 = vmatprep.subr.bf16.mxu0 0
    %351 = vmatpush1.bf16.msra.mxu0 0
    %352 = vmatprep.subr.bf16.mxu0 0
    %353 = vmatpush1.bf16.msra.mxu0 0
    %354 = vmatprep.subr.bf16.mxu0 0
    %355 = vmatpush1.bf16.msra.mxu0 0
    %356 = vmatprep.subr.bf16.mxu0 0
    %357 = vmatpush1.bf16.msra.mxu0 0
    %358 = vmatprep.subr.bf16.mxu0 0
    %359 = vmatpush1.bf16.msra.mxu0 0
    %360 = vmatprep.mubr.bf16.mxu0 0
    %361 = vmatmul.mubr.bf16.gmra.mrb[0].mxu0 %v278
    %v362 = vpop.f32.mrb[0].mxu0
    %v363 = vadd.f32 %v322, %v362
    %v364 = vpop.f32.mrb[0].mxu0
    %v365 = vadd.f32 %v324, %v364
    %v366 = vpop.f32.mrb[0].mxu0
    %v367 = vpop.f32.mrb[0].mxu0
    %368 = vdwg.mxu0
    %v369 = vmax.f32 %v363, 0.0
    %v370 = vmax.f32 %v365, 0.0
    %v371 = vpack.c.bf16 %v369, %v369
    %v372 = vpack.c.bf16 %v370, %v370
    %v373 = vld [vmem:[%s3] sm:$0xf]
    %v374 = vld [vmem:[%s3 + $0x4] sm:$0xf]
    %v375 = vld [vmem:[%s3 + $0x8] sm:$0xf]
    %v376 = vld [vmem:[%s3 + $0xc] sm:$0xf]
    %v377 = vld [vmem:[%s3 + $0x10] sm:$0xf]
    %v378 = vld [vmem:[%s3 + $0x14] sm:$0xf]
    %v379 = vld [vmem:[%s3 + $0x18] sm:$0xf]
    %v380 = vld [vmem:[%s3 + $0x1c] sm:$0xf]
    %v381 = vld [vmem:[%s3 + $0x20] sm:$0xf]
    %v382 = vld [vmem:[%s3 + $0x24] sm:$0xf]
    %v383 = vld [vmem:[%s3 + $0x28] sm:$0xf]
    %v384 = vld [vmem:[%s3 + $0x2c] sm:$0xf]
    %v385 = vld [vmem:[%s3 + $0x30] sm:$0xf]
    %v386 = vld [vmem:[%s3 + $0x34] sm:$0xf]
    %v387 = vld [vmem:[%s3 + $0x38] sm:$0xf]
    %v388 = vld [vmem:[%s3 + $0x3c] sm:$0xf]
    %v389 = vld [vmem:[%s3 + $0x40] sm:$0xf]
    %v390 = vld [vmem:[%s3 + $0x44] sm:$0xf]
    %v391 = vld [vmem:[%s3 + $0x48] sm:$0xf]
    %v392 = vld [vmem:[%s3 + $0x4c] sm:$0xf]
    %v393 = vld [vmem:[%s3 + $0x50] sm:$0xf]
    %v394 = vld [vmem:[%s3 + $0x54] sm:$0xf]
    %v395 = vld [vmem:[%s3 + $0x58] sm:$0xf]
    %v396 = vld [vmem:[%s3 + $0x5c] sm:$0x7]
    %v397 = vld [vmem:[%s4] sm:$0x1]
    %v399 = vlaneseq
    %v400 = vshrl.u32 %v399, 7
    %v401 = vsub.s32 0, %v400
    %v402 = vrot.slane %v397, %v401
    %v428 = vunpack.c.l.b16 %v373
    %v429 = vunpack.c.l.b16 %v374
    %v430 = vunpack.c.l.b16 %v375
    %v431 = vunpack.c.l.b16 %v376
    %v432 = vunpack.c.l.b16 %v377
    %v433 = vunpack.c.l.b16 %v378
    %v434 = vunpack.c.l.b16 %v379
    %v435 = vunpack.c.l.b16 %v380
    %v436 = vunpack.c.l.b16 %v381
    %v437 = vunpack.c.l.b16 %v382
    %v438 = vunpack.c.l.b16 %v383
    %v439 = vunpack.c.l.b16 %v384
    %v440 = vunpack.c.l.b16 %v385
    %v441 = vunpack.c.l.b16 %v386
    %v442 = vunpack.c.l.b16 %v387
    %v443 = vunpack.c.l.b16 %v388
    %v444 = vunpack.c.l.b16 %v389
    %v445 = vunpack.c.l.b16 %v390
    %v446 = vunpack.c.l.b16 %v391
    %v447 = vunpack.c.l.b16 %v392
    %v448 = vunpack.c.l.b16 %v393
    %v449 = vunpack.c.l.b16 %v394
    %v450 = vunpack.c.l.b16 %v395
    %v451 = vunpack.c.l.b16 %v396
    %v452 = vpack.c.b16 %v429, %v428
    %v453 = vpack.c.b16 %v431, %v430
    %v454 = vpack.c.b16 %v433, %v432
    %v455 = vpack.c.b16 %v435, %v434
    %v456 = vpack.c.b16 %v437, %v436
    %v457 = vpack.c.b16 %v439, %v438
    %v458 = vpack.c.b16 %v441, %v440
    %v459 = vpack.c.b16 %v443, %v442
    %v460 = vpack.c.b16 %v445, %v444
    %v461 = vpack.c.b16 %v447, %v446
    %v462 = vpack.c.b16 %v449, %v448
    %v463 = vpack.c.b16 %v451, %v450
    %vm475 = vcmask 506880
    %v477 = vsel %vm475, %v372, 0
    %vm479 = vcmask 1046528
    %v481 = vsel %vm479, %v463, 0
    %483 = vmatprep.subr.bf16.mxu0 0
    %484 = vmatpush1.bf16.msra.mxu0 %v452
    %485 = vmatprep.subr.bf16.mxu0 0
    %486 = vmatpush1.bf16.msra.mxu0 %v453
    %487 = vmatprep.subr.bf16.mxu0 0
    %488 = vmatpush1.bf16.msra.mxu0 %v454
    %489 = vmatprep.subr.bf16.mxu0 0
    %490 = vmatpush1.bf16.msra.mxu0 %v455
    %491 = vmatprep.subr.bf16.mxu0 0
    %492 = vmatpush1.bf16.msra.mxu0 %v456
    %493 = vmatprep.subr.bf16.mxu0 0
    %494 = vmatpush1.bf16.msra.mxu0 %v457
    %495 = vmatprep.subr.bf16.mxu0 0
    %496 = vmatpush1.bf16.msra.mxu0 %v458
    %497 = vmatprep.subr.bf16.mxu0 0
    %498 = vmatpush1.bf16.msra.mxu0 %v459
    %499 = vmatprep.subr.bf16.mxu0 0
    %500 = vmatpush1.bf16.msra.mxu0 %v460
    %501 = vmatprep.subr.bf16.mxu0 0
    %502 = vmatpush1.bf16.msra.mxu0 %v461
    %503 = vmatprep.subr.bf16.mxu0 0
    %504 = vmatpush1.bf16.msra.mxu0 %v462
    %505 = vmatprep.subr.bf16.mxu0 0
    %506 = vmatpush1.bf16.msra.mxu0 %v481
    %507 = vmatprep.subr.bf16.mxu0 0
    %508 = vmatpush1.bf16.msra.mxu0 0
    %509 = vmatprep.subr.bf16.mxu0 0
    %510 = vmatpush1.bf16.msra.mxu0 0
    %511 = vmatprep.subr.bf16.mxu0 0
    %512 = vmatpush1.bf16.msra.mxu0 0
    %513 = vmatprep.subr.bf16.mxu0 0
    %514 = vmatpush1.bf16.msra.mxu0 0
    %515 = vmatprep.mubr.bf16.mxu0 %v477
    %516 = vmatmul.mubr.bf16.gmra.mrb[0].mxu0 %v371
    %v517 = vpop.f32.mrb[0].mxu0
    %v518 = vadd.f32 %v402, %v517
    %v519 = vpop.f32.mrb[0].mxu0
    %v520 = vpop.f32.mrb[0].mxu0
    %v521 = vpop.f32.mrb[0].mxu0
    %522 = vdwg.mxu0
    %v523 = vmax.f32 %v518, 0.0
    %v524 = vpack.c.bf16 %v523, %v523
    %v525 = vld [vmem:[%s5] sm:$0xf]
    %v526 = vld [vmem:[%s5 + $0x4] sm:$0xf]
    %v527 = vld [vmem:[%s5 + $0x8] sm:$0xf]
    %v528 = vld [vmem:[%s5 + $0xc] sm:$0xf]
    %v529 = vld [vmem:[%s5 + $0x10] sm:$0xf]
    %v530 = vld [vmem:[%s5 + $0x14] sm:$0xf]
    %v531 = vld [vmem:[%s5 + $0x18] sm:$0xf]
    %v532 = vld [vmem:[%s5 + $0x1c] sm:$0xf]
    %v533 = vld [vmem:[%s5 + $0x20] sm:$0xf]
    %v534 = vld [vmem:[%s5 + $0x24] sm:$0x3]
    %v535 = vld [vmem:[%s6] sm:$0x1]
    %v537 = vlaneseq
    %v538 = vshrl.u32 %v537, 7
    %v539 = vsub.s32 0, %v538
    %v540 = vrot.slane %v535, %v539
    %v552 = vunpack.c.l.b16 %v525
    %v553 = vunpack.c.l.b16 %v526
    %v554 = vunpack.c.l.b16 %v527
    %v555 = vunpack.c.l.b16 %v528
    %v556 = vunpack.c.l.b16 %v529
    %v557 = vunpack.c.l.b16 %v530
    %v558 = vunpack.c.l.b16 %v531
    %v559 = vunpack.c.l.b16 %v532
    %v560 = vunpack.c.l.b16 %v533
    %v561 = vunpack.c.l.b16 %v534
    %v562 = vpack.c.b16 %v553, %v552
    %v563 = vpack.c.b16 %v555, %v554
    %v564 = vpack.c.b16 %v557, %v556
    %v565 = vpack.c.b16 %v559, %v558
    %v566 = vpack.c.b16 %v561, %v560
    %vm571 = vcmask 613376
    %v573 = vsel %vm571, %v524, 0
    %vm575 = vcmask 1044480
    %vm576 = vcmask 1045504
    %v577 = vsel %vm575, 4294967295, 65535
    %v578 = vsel %vm576, %v577, 0
    %v580 = vand.u32 %v566, %v578
    %582 = vmatprep.subr.bf16.mxu0 0
    %583 = vmatpush1.bf16.msra.mxu0 %v562
    %584 = vmatprep.subr.bf16.mxu0 0
    %585 = vmatpush1.bf16.msra.mxu0 %v563
    %586 = vmatprep.subr.bf16.mxu0 0
    %587 = vmatpush1.bf16.msra.mxu0 %v564
    %588 = vmatprep.subr.bf16.mxu0 0
    %589 = vmatpush1.bf16.msra.mxu0 %v565
    %590 = vmatprep.subr.bf16.mxu0 0
    %591 = vmatpush1.bf16.msra.mxu0 %v580
    %592 = vmatprep.subr.bf16.mxu0 0
    %593 = vmatpush1.bf16.msra.mxu0 0
    %594 = vmatprep.subr.bf16.mxu0 0
    %595 = vmatpush1.bf16.msra.mxu0 0
    %596 = vmatprep.subr.bf16.mxu0 0
    %597 = vmatpush1.bf16.msra.mxu0 0
    %598 = vmatprep.subr.bf16.mxu0 0
    %599 = vmatpush1.bf16.msra.mxu0 0
    %600 = vmatprep.subr.bf16.mxu0 0
    %601 = vmatpush1.bf16.msra.mxu0 0
    %602 = vmatprep.subr.bf16.mxu0 0
    %603 = vmatpush1.bf16.msra.mxu0 0
    %604 = vmatprep.subr.bf16.mxu0 0
    %605 = vmatpush1.bf16.msra.mxu0 0
    %606 = vmatprep.subr.bf16.mxu0 0
    %607 = vmatpush1.bf16.msra.mxu0 0
    %608 = vmatprep.subr.bf16.mxu0 0
    %609 = vmatpush1.bf16.msra.mxu0 0
    %610 = vmatprep.subr.bf16.mxu0 0
    %611 = vmatpush1.bf16.msra.mxu0 0
    %612 = vmatprep.subr.bf16.mxu0 0
    %613 = vmatpush1.bf16.msra.mxu0 0
    %614 = vmatprep.mubr.bf16.mxu0 0
    %615 = vmatmul.mubr.bf16.gmra.mrb[0].mxu0 %v573
    %v616 = vpop.f32.mrb[0].mxu0
    %v617 = vadd.f32 %v540, %v616
    %v618 = vpop.f32.mrb[0].mxu0
    %v619 = vpop.f32.mrb[0].mxu0
    %v620 = vpop.f32.mrb[0].mxu0
    %621 = vdwg.mxu0
    %v622 = vmax.f32 %v617, 0.0
    %v623 = vld [vmem:[%s7] sm:$0x1]
    %v624 = vpack.c.bf16 %v622, %v622
    %v625 = vld [vmem:[#allocation2] sm:$0x1]
    %627 = vset.pattern.permute.xlu0 0
    %628 = vperm.xlu0 %627, %v625
    %v629 = vpop.permute.xlu0 %628
    %v631 = vlaneseq
    %v632 = vshrl.u32 %v631, 7
    %v633 = vsub.s32 0, %v632
    %v634 = vrot.slane %v629, %v633
    %vm635 = vcmask 162816
    %v637 = vsel %vm635, %v623, 0
    %v640 = vsel %vm635, %v624, 0
    %642 = vmatprep.subr.bf16.mxu0 0
    %643 = vmatpush1.bf16.xpose.msra.mxu0 %v640
    %644 = vmatprep.subr.bf16.mxu0 0
    %645 = vmatpush1.bf16.xpose.msra.mxu0 0
    %646 = vmatprep.subr.bf16.mxu0 0
    %647 = vmatpush1.bf16.xpose.msra.mxu0 0
    %648 = vmatprep.subr.bf16.mxu0 0
    %649 = vmatpush1.bf16.xpose.msra.mxu0 0
    %650 = vmatprep.subr.bf16.mxu0 0
    %651 = vmatpush1.bf16.xpose.msra.mxu0 0
    %652 = vmatprep.subr.bf16.mxu0 0
    %653 = vmatpush1.bf16.xpose.msra.mxu0 0
    %654 = vmatprep.subr.bf16.mxu0 0
    %655 = vmatpush1.bf16.xpose.msra.mxu0 0
    %656 = vmatprep.subr.bf16.mxu0 0
    %657 = vmatpush1.bf16.xpose.msra.mxu0 0
    %658 = vmatprep.subr.bf16.mxu0 0
    %659 = vmatpush1.bf16.xpose.msra.mxu0 0
    %660 = vmatprep.subr.bf16.mxu0 0
    %661 = vmatpush1.bf16.xpose.msra.mxu0 0
    %662 = vmatprep.subr.bf16.mxu0 0
    %663 = vmatpush1.bf16.xpose.msra.mxu0 0
    %664 = vmatprep.subr.bf16.mxu0 0
    %665 = vmatpush1.bf16.xpose.msra.mxu0 0
    %666 = vmatprep.subr.bf16.mxu0 0
    %667 = vmatpush1.bf16.xpose.msra.mxu0 0
    %668 = vmatprep.subr.bf16.mxu0 0
    %669 = vmatpush1.bf16.xpose.msra.mxu0 0
    %670 = vmatprep.subr.bf16.mxu0 0
    %671 = vmatpush1.bf16.xpose.msra.mxu0 0
    %672 = vmatprep.subr.bf16.mxu0 0
    %673 = vmatpush1.bf16.xpose.msra.mxu0 0
    %674 = vmatprep.mubr.bf16.mxu0 0
    %675 = vmatmul.mubr.bf16.gmra.mrb[0].mxu0 %v637
    %v676 = vpop.f32.mrb[0].mxu0
    %v677 = vadd.f32 %v634, %v676
    %v678 = vpop.f32.mrb[0].mxu0
    %v679 = vpop.f32.mrb[0].mxu0
    %v680 = vpop.f32.mrb[0].mxu0
    %681 = vdwg.mxu0
    %vm682 = vcmask 57344
    %683 = vst.msk [vmem:[#allocation3] sm:$0x1] %vm682, %v677
    // Predicated region
    $region38: #{tpu_custom_call.1} parent=1 // pred_check
      _
    $region39: #{tpu_custom_call.1} parent=1 // pred_check_branch
      %685 = sbr.rel (0) target = $region41
    $region40: #{tpu_custom_call.1} parent=1 // pred_region
      %s687 = ssub.s32 16, 16
      %688 = vsyncadd [#allocation4], %s687
      %s690 = sshll.u32 [#allocation3], 4
      %s691 = int_to_ptr.vmem [resolvable:$true] %s690
      %693 = dma.vmem_to_hbm [thread:$0]  %s691, 16, %s9, [#allocation4]
    $region41: #{tpu_custom_call.1} parent=1 // pred_fallthru
      _
    // Predicated region
    $region42: #{tpu_custom_call.1} parent=1 // pred_check
      _
    $region43: #{tpu_custom_call.1} parent=1 // pred_check_branch
      %695 = sbr.rel (0) target = $region45
    $region44: #{tpu_custom_call.1} parent=1 // pred_region
      %696 = dma.done [#allocation4], 16
    $region45: #{tpu_custom_call.1} parent=1 // pred_fallthru
      _
    %697 = vsyncpa [#allocation4], 1

// kernel: tpu_custom_call.1
$region0: #{tpu_custom_call.1}
  #allocation0 [shape = 'u32[]', space=smem, size = 0x4, offset = 0x4, fixed_abs, tag = 'smem constant byte address 0x4 - core index']
  #allocation1 [shape = 'u32[144,128]{1,0:T(1,128)}', space=vmem, size = 0x12000, scoped, tag = 'internal scratch']
  #allocation2 [shape = 'f32[1,1]{1,0:T(1,128)S(1)}', space=vmem, size = 0x200, scoped, tag = 'scoped memory for tpu_custom_call.1']
  %s0 = inlined_call_operand.vmem [shape: f32[8,290], index: 0, kind: input, shape index: {}]
  %s1 = inlined_call_operand.vmem [shape: bf16[290,190], index: 1, kind: input, shape index: {}]
  %s2 = inlined_call_operand.vmem [shape: f32[1,190], index: 2, kind: input, shape index: {}]
  %s3 = inlined_call_operand.vmem [shape: bf16[190,75], index: 3, kind: input, shape index: {}]
  %s4 = inlined_call_operand.vmem [shape: f32[1,75], index: 4, kind: input, shape index: {}]
  %s5 = inlined_call_operand.vmem [shape: bf16[75,20], index: 5, kind: input, shape index: {}]
  %s6 = inlined_call_operand.vmem [shape: f32[1,20], index: 6, kind: input, shape index: {}]
  %s7 = inlined_call_operand.vmem [shape: bf16[1,20], index: 7, kind: input, shape index: {}]
  %s8 = inlined_call_operand.<no memory space> [shape: f32[1,1], index: 8, kind: input, shape index: {}]
  %s9 = inlined_call_operand.hbm [shape: f32[1,8], index: 9, kind: output, shape index: {}]
  %s10 = sld [smem:[#allocation0]]
  $region46: #{tpu_custom_call.1} parent=0
    _
  %s12 = ssub.s32 1, %s10
  %s13 = scalar_select 0, %s12, %s10
  %v14 = vstv %s8
  %15 = vst [vmem:[#allocation2] sm:$0x1] %v14
  $region1: #{tpu_custom_call.1} parent=0
    #allocation3 [shape = 'u8[512]{0}', space=vmem, size = 0x400, scoped, tag = 'output window, operand 0, single buffered']
    #allocation4 [shape = 's32[1]{0}', space=sflag, size = 0x4, scoped, tag = 'scoped memory for tpu_custom_call.1']
    %16 = vsyncpa [#allocation4], 0
    // Predicated region
    $region2: #{tpu_custom_call.1} parent=1 // pred_check
      _
    $region3: #{tpu_custom_call.1} parent=1 // pred_check_branch
      %18 = sbr.rel (0) target = $region5
    $region4: #{tpu_custom_call.1} parent=1 // pred_region
      _
    $region5: #{tpu_custom_call.1} parent=1 // pred_fallthru
      _
    // Predicated region
    $region6: #{tpu_custom_call.1} parent=1 // pred_check
      _
    $region7: #{tpu_custom_call.1} parent=1 // pred_check_branch
      %20 = sbr.rel (0) target = $region9
    $region8: #{tpu_custom_call.1} parent=1 // pred_region
      _
    $region9: #{tpu_custom_call.1} parent=1 // pred_fallthru
      _
    // Predicated region
    $region10: #{tpu_custom_call.1} parent=1 // pred_check
      _
    $region11: #{tpu_custom_call.1} parent=1 // pred_check_branch
      %22 = sbr.rel (0) target = $region13
    $region12: #{tpu_custom_call.1} parent=1 // pred_region
      _
    $region13: #{tpu_custom_call.1} parent=1 // pred_fallthru
      _
    // Predicated region
    $region14: #{tpu_custom_call.1} parent=1 // pred_check
      _
    $region15: #{tpu_custom_call.1} parent=1 // pred_check_branch
      %24 = sbr.rel (0) target = $region17
    $region16: #{tpu_custom_call.1} parent=1 // pred_region
      _
    $region17: #{tpu_custom_call.1} parent=1 // pred_fallthru
      _
    // Predicated region
    $region18: #{tpu_custom_call.1} parent=1 // pred_check
      _
    $region19: #{tpu_custom_call.1} parent=1 // pred_check_branch
      %26 = sbr.rel (0) target = $region21
    $region20: #{tpu_custom_call.1} parent=1 // pred_region
      _
    $region21: #{tpu_custom_call.1} parent=1 // pred_fallthru
      _
    // Predicated region
    $region22: #{tpu_custom_call.1} parent=1 // pred_check
      _
    $region23: #{tpu_custom_call.1} parent=1 // pred_check_branch
      %28 = sbr.rel (0) target = $region25
    $region24: #{tpu_custom_call.1} parent=1 // pred_region
      _
    $region25: #{tpu_custom_call.1} parent=1 // pred_fallthru
      _
    // Predicated region
    $region26: #{tpu_custom_call.1} parent=1 // pred_check
      _
    $region27: #{tpu_custom_call.1} parent=1 // pred_check_branch
      %30 = sbr.rel (0) target = $region29
    $region28: #{tpu_custom_call.1} parent=1 // pred_region
      _
    $region29: #{tpu_custom_call.1} parent=1 // pred_fallthru
      _
    // Predicated region
    $region30: #{tpu_custom_call.1} parent=1 // pred_check
      _
    $region31: #{tpu_custom_call.1} parent=1 // pred_check_branch
      %32 = sbr.rel (0) target = $region33
    $region32: #{tpu_custom_call.1} parent=1 // pred_region
      _
    $region33: #{tpu_custom_call.1} parent=1 // pred_fallthru
      _
    // Predicated region
    $region34: #{tpu_custom_call.1} parent=1 // pred_check
      _
    $region35: #{tpu_custom_call.1} parent=1 // pred_check_branch
      %34 = sbr.rel (0) target = $region37
    $region36: #{tpu_custom_call.1} parent=1 // pred_region
      _
    $region37: #{tpu_custom_call.1} parent=1 // pred_fallthru
      _
    %v36 = vld [vmem:[%s0] sm:$0xff]
    %v37 = vld [vmem:[%s0 + $0x8] sm:$0xff]
    %v38 = vld [vmem:[%s0 + $0x10] sm:$0xff]
    %v39 = vpack.c.bf16 %v36, %v36
    %v40 = vpack.c.bf16 %v37, %v37
    %v41 = vpack.c.bf16 %v38, %v38
    %v42 = vld [vmem:[%s1] sm:$0xff]
    %v43 = vld [vmem:[%s1 + $0x8] sm:$0xff]
    %v44 = vld [vmem:[%s1 + $0x10] sm:$0xff]
    %v45 = vld [vmem:[%s1 + $0x18] sm:$0xff]
    %v46 = vld [vmem:[%s1 + $0x20] sm:$0xff]
    %v47 = vld [vmem:[%s1 + $0x28] sm:$0xff]
    %v48 = vld [vmem:[%s1 + $0x30] sm:$0xff]
    %v49 = vld [vmem:[%s1 + $0x38] sm:$0xff]
    %v50 = vld [vmem:[%s1 + $0x40] sm:$0xff]
    %v51 = vld [vmem:[%s1 + $0x48] sm:$0xff]
    %v52 = vld [vmem:[%s1 + $0x50] sm:$0xff]
    %v53 = vld [vmem:[%s1 + $0x58] sm:$0xff]
    %v54 = vld [vmem:[%s1 + $0x60] sm:$0xff]
    %v55 = vld [vmem:[%s1 + $0x68] sm:$0xff]
    %v56 = vld [vmem:[%s1 + $0x70] sm:$0xff]
    %v57 = vld [vmem:[%s1 + $0x78] sm:$0xff]
    %v58 = vld [vmem:[%s1 + $0x80] sm:$0xff]
    %v59 = vld [vmem:[%s1 + $0x88] sm:$0xff]
    %v60 = vld [vmem:[%s1 + $0x90] sm:$0xff]
    %v61 = vld [vmem:[%s1 + $0x98] sm:$0xff]
    %v62 = vld [vmem:[%s1 + $0xa0] sm:$0xff]
    %v63 = vld [vmem:[%s1 + $0xa8] sm:$0xff]
    %v64 = vld [vmem:[%s1 + $0xb0] sm:$0xff]
    %v65 = vld [vmem:[%s1 + $0xb8] sm:$0xff]
    %v66 = vld [vmem:[%s1 + $0xc0] sm:$0xff]
    %v67 = vld [vmem:[%s1 + $0xc8] sm:$0xff]
    %v68 = vld [vmem:[%s1 + $0xd0] sm:$0xff]
    %v69 = vld [vmem:[%s1 + $0xd8] sm:$0xff]
    %v70 = vld [vmem:[%s1 + $0xe0] sm:$0xff]
    %v71 = vld [vmem:[%s1 + $0xe8] sm:$0xff]
    %v72 = vld [vmem:[%s1 + $0xf0] sm:$0xff]
    %v73 = vld [vmem:[%s1 + $0xf8] sm:$0xff]
    %v74 = vld [vmem:[%s1 + $0x100] sm:$0xff]
    %v75 = vld [vmem:[%s1 + $0x108] sm:$0xff]
    %v76 = vld [vmem:[%s1 + $0x110] sm:$0xff]
    %v77 = vld [vmem:[%s1 + $0x118] sm:$0xff]
    %v78 = vld [vmem:[%s1 + $0x120] sm:$0x11]
    %v79 = vld [vmem:[%s2] sm:$0x3]
    %v81 = vlaneseq
    %v82 = vshrl.u32 %v81, 7
    %v83 = vsub.s32 0, %v82
    %v84 = vrot.slane %v79, %v83
    %v85 = vlaneseq
    %v86 = vshrl.u32 %v85, 7
    %v87 = vsub.s32 1, %v86
    %v88 = vrot.slane %v79, %v87
    %v128 = vunpack.c.l.b16 %v42
    %v129 = vunpack.c.h.b16 %v42
    %v130 = vunpack.c.l.b16 %v43
    %v131 = vunpack.c.h.b16 %v43
    %v132 = vunpack.c.l.b16 %v44
    %v133 = vunpack.c.h.b16 %v44
    %v134 = vunpack.c.l.b16 %v45
    %v135 = vunpack.c.h.b16 %v45
    %v136 = vunpack.c.l.b16 %v46
    %v137 = vunpack.c.h.b16 %v46
    %v138 = vunpack.c.l.b16 %v47
    %v139 = vunpack.c.h.b16 %v47
    %v140 = vunpack.c.l.b16 %v48
    %v141 = vunpack.c.h.b16 %v48
    %v142 = vunpack.c.l.b16 %v49
    %v143 = vunpack.c.h.b16 %v49
    %v144 = vunpack.c.l.b16 %v50
    %v145 = vunpack.c.h.b16 %v50
    %v146 = vunpack.c.l.b16 %v51
    %v147 = vunpack.c.h.b16 %v51
    %v148 = vunpack.c.l.b16 %v52
    %v149 = vunpack.c.h.b16 %v52
    %v150 = vunpack.c.l.b16 %v53
    %v151 = vunpack.c.h.b16 %v53
    %v152 = vunpack.c.l.b16 %v54
    %v153 = vunpack.c.h.b16 %v54
    %v154 = vunpack.c.l.b16 %v55
    %v155 = vunpack.c.h.b16 %v55
    %v156 = vunpack.c.l.b16 %v56
    %v157 = vunpack.c.h.b16 %v56
    %v158 = vunpack.c.l.b16 %v57
    %v159 = vunpack.c.h.b16 %v57
    %v160 = vunpack.c.l.b16 %v58
    %v161 = vunpack.c.h.b16 %v58
    %v162 = vunpack.c.l.b16 %v59
    %v163 = vunpack.c.h.b16 %v59
    %v164 = vunpack.c.l.b16 %v60
    %v165 = vunpack.c.h.b16 %v60
    %v166 = vunpack.c.l.b16 %v61
    %v167 = vunpack.c.h.b16 %v61
    %v168 = vunpack.c.l.b16 %v62
    %v169 = vunpack.c.h.b16 %v62
    %v170 = vunpack.c.l.b16 %v63
    %v171 = vunpack.c.h.b16 %v63
    %v172 = vunpack.c.l.b16 %v64
    %v173 = vunpack.c.h.b16 %v64
    %v174 = vunpack.c.l.b16 %v65
    %v175 = vunpack.c.h.b16 %v65
    %v176 = vunpack.c.l.b16 %v66
    %v177 = vunpack.c.h.b16 %v66
    %v178 = vunpack.c.l.b16 %v67
    %v179 = vunpack.c.h.b16 %v67
    %v180 = vunpack.c.l.b16 %v68
    %v181 = vunpack.c.h.b16 %v68
    %v182 = vunpack.c.l.b16 %v69
    %v183 = vunpack.c.h.b16 %v69
    %v184 = vunpack.c.l.b16 %v70
    %v185 = vunpack.c.h.b16 %v70
    %v186 = vunpack.c.l.b16 %v71
    %v187 = vunpack.c.h.b16 %v71
    %v188 = vunpack.c.l.b16 %v72
    %v189 = vunpack.c.h.b16 %v72
    %v190 = vunpack.c.l.b16 %v73
    %v191 = vunpack.c.h.b16 %v73
    %v192 = vunpack.c.l.b16 %v74
    %v193 = vunpack.c.h.b16 %v74
    %v194 = vunpack.c.l.b16 %v75
    %v195 = vunpack.c.h.b16 %v75
    %v196 = vunpack.c.l.b16 %v76
    %v197 = vunpack.c.h.b16 %v76
    %v198 = vunpack.c.l.b16 %v77
    %v199 = vunpack.c.h.b16 %v77
    %v200 = vunpack.c.l.b16 %v78
    %v201 = vunpack.c.h.b16 %v78
    %v202 = vpack.c.b16 %v130, %v128
    %v203 = vpack.c.b16 %v131, %v129
    %v204 = vpack.c.b16 %v134, %v132
    %v205 = vpack.c.b16 %v135, %v133
    %v206 = vpack.c.b16 %v138, %v136
    %v207 = vpack.c.b16 %v139, %v137
    %v208 = vpack.c.b16 %v142, %v140
    %v209 = vpack.c.b16 %v143, %v141
    %v210 = vpack.c.b16 %v146, %v144
    %v211 = vpack.c.b16 %v147, %v145
    %v212 = vpack.c.b16 %v150, %v148
    %v213 = vpack.c.b16 %v151, %v149
    %v214 = vpack.c.b16 %v154, %v152
    %v215 = vpack.c.b16 %v155, %v153
    %v216 = vpack.c.b16 %v158, %v156
    %v217 = vpack.c.b16 %v159, %v157
    %v218 = vpack.c.b16 %v162, %v160
    %v219 = vpack.c.b16 %v163, %v161
    %v220 = vpack.c.b16 %v166, %v164
    %v221 = vpack.c.b16 %v167, %v165
    %v222 = vpack.c.b16 %v170, %v168
    %v223 = vpack.c.b16 %v171, %v169
    %v224 = vpack.c.b16 %v174, %v172
    %v225 = vpack.c.b16 %v175, %v173
    %v226 = vpack.c.b16 %v178, %v176
    %v227 = vpack.c.b16 %v179, %v177
    %v228 = vpack.c.b16 %v182, %v180
    %v229 = vpack.c.b16 %v183, %v181
    %v230 = vpack.c.b16 %v186, %v184
    %v231 = vpack.c.b16 %v187, %v185
    %v232 = vpack.c.b16 %v190, %v188
    %v233 = vpack.c.b16 %v191, %v189
    %v234 = vpack.c.b16 %v194, %v192
    %v235 = vpack.c.b16 %v195, %v193
    %v236 = vpack.c.b16 %v198, %v196
    %v237 = vpack.c.b16 %v199, %v197
    %v238 = vpack.c.b16 %v200, %v200
    %v239 = vpack.c.b16 %v201, %v201
    %vm276 = vcmask 277504
    %v278 = vsel %vm276, %v41, 0
    %vm280 = vcmask 1040384
    %v282 = vsel %vm280, %v238, 0
    %v285 = vsel %vm280, %v239, 0
    %287 = vmatprep.subr.bf16.mxu0 %v203
    %288 = vmatpush1.bf16.msra.mxu0 %v202
    %289 = vmatprep.subr.bf16.mxu0 %v205
    %290 = vmatpush1.bf16.msra.mxu0 %v204
    %291 = vmatprep.subr.bf16.mxu0 %v207
    %292 = vmatpush1.bf16.msra.mxu0 %v206
    %293 = vmatprep.subr.bf16.mxu0 %v209
    %294 = vmatpush1.bf16.msra.mxu0 %v208
    %295 = vmatprep.subr.bf16.mxu0 %v211
    %296 = vmatpush1.bf16.msra.mxu0 %v210
    %297 = vmatprep.subr.bf16.mxu0 %v213
    %298 = vmatpush1.bf16.msra.mxu0 %v212
    %299 = vmatprep.subr.bf16.mxu0 %v215
    %300 = vmatpush1.bf16.msra.mxu0 %v214
    %301 = vmatprep.subr.bf16.mxu0 %v217
    %302 = vmatpush1.bf16.msra.mxu0 %v216
    %303 = vmatprep.subr.bf16.mxu0 %v219
    %304 = vmatpush1.bf16.msra.mxu0 %v218
    %305 = vmatprep.subr.bf16.mxu0 %v221
    %306 = vmatpush1.bf16.msra.mxu0 %v220
    %307 = vmatprep.subr.bf16.mxu0 %v223
    %308 = vmatpush1.bf16.msra.mxu0 %v222
    %309 = vmatprep.subr.bf16.mxu0 %v225
    %310 = vmatpush1.bf16.msra.mxu0 %v224
    %311 = vmatprep.subr.bf16.mxu0 %v227
    %312 = vmatpush1.bf16.msra.mxu0 %v226
    %313 = vmatprep.subr.bf16.mxu0 %v229
    %314 = vmatpush1.bf16.msra.mxu0 %v228
    %315 = vmatprep.subr.bf16.mxu0 %v231
    %316 = vmatpush1.bf16.msra.mxu0 %v230
    %317 = vmatprep.subr.bf16.mxu0 %v233
    %318 = vmatpush1.bf16.msra.mxu0 %v232
    %319 = vmatprep.mubr.bf16.mxu0 %v40
    %320 = vmatmul.mubr.bf16.gmra.mrb[0].mxu0 %v39
    %v321 = vpop.f32.mrb[0].mxu0
    %v322 = vadd.f32 %v84, %v321
    %v323 = vpop.f32.mrb[0].mxu0
    %v324 = vadd.f32 %v88, %v323
    %v325 = vpop.f32.mrb[0].mxu0
    %v326 = vpop.f32.mrb[0].mxu0
    %327 = vdwg.mxu0
    %328 = vmatprep.subr.bf16.mxu0 %v235
    %329 = vmatpush1.bf16.msra.mxu0 %v234
    %330 = vmatprep.subr.bf16.mxu0 %v237
    %331 = vmatpush1.bf16.msra.mxu0 %v236
    %332 = vmatprep.subr.bf16.mxu0 %v285
    %333 = vmatpush1.bf16.msra.mxu0 %v282
    %334 = vmatprep.subr.bf16.mxu0 0
    %335 = vmatpush1.bf16.msra.mxu0 0
    %336 = vmatprep.subr.bf16.mxu0 0
    %337 = vmatpush1.bf16.msra.mxu0 0
    %338 = vmatprep.subr.bf16.mxu0 0
    %339 = vmatpush1.bf16.msra.mxu0 0
    %340 = vmatprep.subr.bf16.mxu0 0
    %341 = vmatpush1.bf16.msra.mxu0 0
    %342 = vmatprep.subr.bf16.mxu0 0
    %343 = vmatpush1.bf16.msra.mxu0 0
    %344 = vmatprep.subr.bf16.mxu0 0
    %345 = vmatpush1.bf16.msra.mxu0 0
    %346 = vmatprep.subr.bf16.mxu0 0
    %347 = vmatpush1.bf16.msra.mxu0 0
    %348 = vmatprep.subr.bf16.mxu0 0
    %349 = vmatpush1.bf16.msra.mxu0 0
    %350 = vmatprep.subr.bf16.mxu0 0
    %351 = vmatpush1.bf16.msra.mxu0 0
    %352 = vmatprep.subr.bf16.mxu0 0
    %353 = vmatpush1.bf16.msra.mxu0 0
    %354 = vmatprep.subr.bf16.mxu0 0
    %355 = vmatpush1.bf16.msra.mxu0 0
    %356 = vmatprep.subr.bf16.mxu0 0
    %357 = vmatpush1.bf16.msra.mxu0 0
    %358 = vmatprep.subr.bf16.mxu0 0
    %359 = vmatpush1.bf16.msra.mxu0 0
    %360 = vmatprep.mubr.bf16.mxu0 0
    %361 = vmatmul.mubr.bf16.gmra.mrb[0].mxu0 %v278
    %v362 = vpop.f32.mrb[0].mxu0
    %v363 = vadd.f32 %v322, %v362
    %v364 = vpop.f32.mrb[0].mxu0
    %v365 = vadd.f32 %v324, %v364
    %v366 = vpop.f32.mrb[0].mxu0
    %v367 = vpop.f32.mrb[0].mxu0
    %368 = vdwg.mxu0
    %v369 = vmax.f32 %v363, 0.0
    %v370 = vmax.f32 %v365, 0.0
    %v371 = vpack.c.bf16 %v369, %v369
    %v372 = vpack.c.bf16 %v370, %v370
    %v373 = vld [vmem:[%s3] sm:$0xf]
    %v374 = vld [vmem:[%s3 + $0x4] sm:$0xf]
    %v375 = vld [vmem:[%s3 + $0x8] sm:$0xf]
    %v376 = vld [vmem:[%s3 + $0xc] sm:$0xf]
    %v377 = vld [vmem:[%s3 + $0x10] sm:$0xf]
    %v378 = vld [vmem:[%s3 + $0x14] sm:$0xf]
    %v379 = vld [vmem:[%s3 + $0x18] sm:$0xf]
    %v380 = vld [vmem:[%s3 + $0x1c] sm:$0xf]
    %v381 = vld [vmem:[%s3 + $0x20] sm:$0xf]
    %v382 = vld [vmem:[%s3 + $0x24] sm:$0xf]
    %v383 = vld [vmem:[%s3 + $0x28] sm:$0xf]
    %v384 = vld [vmem:[%s3 + $0x2c] sm:$0xf]
    %v385 = vld [vmem:[%s3 + $0x30] sm:$0xf]
    %v386 = vld [vmem:[%s3 + $0x34] sm:$0xf]
    %v387 = vld [vmem:[%s3 + $0x38] sm:$0xf]
    %v388 = vld [vmem:[%s3 + $0x3c] sm:$0xf]
    %v389 = vld [vmem:[%s3 + $0x40] sm:$0xf]
    %v390 = vld [vmem:[%s3 + $0x44] sm:$0xf]
    %v391 = vld [vmem:[%s3 + $0x48] sm:$0xf]
    %v392 = vld [vmem:[%s3 + $0x4c] sm:$0xf]
    %v393 = vld [vmem:[%s3 + $0x50] sm:$0xf]
    %v394 = vld [vmem:[%s3 + $0x54] sm:$0xf]
    %v395 = vld [vmem:[%s3 + $0x58] sm:$0xf]
    %v396 = vld [vmem:[%s3 + $0x5c] sm:$0x7]
    %v397 = vld [vmem:[%s4] sm:$0x1]
    %v399 = vlaneseq
    %v400 = vshrl.u32 %v399, 7
    %v401 = vsub.s32 0, %v400
    %v402 = vrot.slane %v397, %v401
    %v428 = vunpack.c.l.b16 %v373
    %v429 = vunpack.c.l.b16 %v374
    %v430 = vunpack.c.l.b16 %v375
    %v431 = vunpack.c.l.b16 %v376
    %v432 = vunpack.c.l.b16 %v377
    %v433 = vunpack.c.l.b16 %v378
    %v434 = vunpack.c.l.b16 %v379
    %v435 = vunpack.c.l.b16 %v380
    %v436 = vunpack.c.l.b16 %v381
    %v437 = vunpack.c.l.b16 %v382
    %v438 = vunpack.c.l.b16 %v383
    %v439 = vunpack.c.l.b16 %v384
    %v440 = vunpack.c.l.b16 %v385
    %v441 = vunpack.c.l.b16 %v386
    %v442 = vunpack.c.l.b16 %v387
    %v443 = vunpack.c.l.b16 %v388
    %v444 = vunpack.c.l.b16 %v389
    %v445 = vunpack.c.l.b16 %v390
    %v446 = vunpack.c.l.b16 %v391
    %v447 = vunpack.c.l.b16 %v392
    %v448 = vunpack.c.l.b16 %v393
    %v449 = vunpack.c.l.b16 %v394
    %v450 = vunpack.c.l.b16 %v395
    %v451 = vunpack.c.l.b16 %v396
    %v452 = vpack.c.b16 %v429, %v428
    %v453 = vpack.c.b16 %v431, %v430
    %v454 = vpack.c.b16 %v433, %v432
    %v455 = vpack.c.b16 %v435, %v434
    %v456 = vpack.c.b16 %v437, %v436
    %v457 = vpack.c.b16 %v439, %v438
    %v458 = vpack.c.b16 %v441, %v440
    %v459 = vpack.c.b16 %v443, %v442
    %v460 = vpack.c.b16 %v445, %v444
    %v461 = vpack.c.b16 %v447, %v446
    %v462 = vpack.c.b16 %v449, %v448
    %v463 = vpack.c.b16 %v451, %v450
    %vm475 = vcmask 506880
    %v477 = vsel %vm475, %v372, 0
    %vm479 = vcmask 1046528
    %v481 = vsel %vm479, %v463, 0
    %483 = vmatprep.subr.bf16.mxu0 0
    %484 = vmatpush1.bf16.msra.mxu0 %v452
    %485 = vmatprep.subr.bf16.mxu0 0
    %486 = vmatpush1.bf16.msra.mxu0 %v453
    %487 = vmatprep.subr.bf16.mxu0 0
    %488 = vmatpush1.bf16.msra.mxu0 %v454
    %489 = vmatprep.subr.bf16.mxu0 0
    %490 = vmatpush1.bf16.msra.mxu0 %v455
    %491 = vmatprep.subr.bf16.mxu0 0
    %492 = vmatpush1.bf16.msra.mxu0 %v456
    %493 = vmatprep.subr.bf16.mxu0 0
    %494 = vmatpush1.bf16.msra.mxu0 %v457
    %495 = vmatprep.subr.bf16.mxu0 0
    %496 = vmatpush1.bf16.msra.mxu0 %v458
    %497 = vmatprep.subr.bf16.mxu0 0
    %498 = vmatpush1.bf16.msra.mxu0 %v459
    %499 = vmatprep.subr.bf16.mxu0 0
    %500 = vmatpush1.bf16.msra.mxu0 %v460
    %501 = vmatprep.subr.bf16.mxu0 0
    %502 = vmatpush1.bf16.msra.mxu0 %v461
    %503 = vmatprep.subr.bf16.mxu0 0
    %504 = vmatpush1.bf16.msra.mxu0 %v462
    %505 = vmatprep.subr.bf16.mxu0 0
    %506 = vmatpush1.bf16.msra.mxu0 %v481
    %507 = vmatprep.subr.bf16.mxu0 0
    %508 = vmatpush1.bf16.msra.mxu0 0
    %509 = vmatprep.subr.bf16.mxu0 0
    %510 = vmatpush1.bf16.msra.mxu0 0
    %511 = vmatprep.subr.bf16.mxu0 0
    %512 = vmatpush1.bf16.msra.mxu0 0
    %513 = vmatprep.subr.bf16.mxu0 0
    %514 = vmatpush1.bf16.msra.mxu0 0
    %515 = vmatprep.mubr.bf16.mxu0 %v477
    %516 = vmatmul.mubr.bf16.gmra.mrb[0].mxu0 %v371
    %v517 = vpop.f32.mrb[0].mxu0
    %v518 = vadd.f32 %v402, %v517
    %v519 = vpop.f32.mrb[0].mxu0
    %v520 = vpop.f32.mrb[0].mxu0
    %v521 = vpop.f32.mrb[0].mxu0
    %522 = vdwg.mxu0
    %v523 = vmax.f32 %v518, 0.0
    %v524 = vpack.c.bf16 %v523, %v523
    %v525 = vld [vmem:[%s5] sm:$0xf]
    %v526 = vld [vmem:[%s5 + $0x4] sm:$0xf]
    %v527 = vld [vmem:[%s5 + $0x8] sm:$0xf]
    %v528 = vld [vmem:[%s5 + $0xc] sm:$0xf]
    %v529 = vld [vmem:[%s5 + $0x10] sm:$0xf]
    %v530 = vld [vmem:[%s5 + $0x14] sm:$0xf]
    %v531 = vld [vmem:[%s5 + $0x18] sm:$0xf]
    %v532 = vld [vmem:[%s5 + $0x1c] sm:$0xf]
    %v533 = vld [vmem:[%s5 + $0x20] sm:$0xf]
    %v534 = vld [vmem:[%s5 + $0x24] sm:$0x3]
    %v535 = vld [vmem:[%s6] sm:$0x1]
    %v537 = vlaneseq
    %v538 = vshrl.u32 %v537, 7
    %v539 = vsub.s32 0, %v538
    %v540 = vrot.slane %v535, %v539
    %v552 = vunpack.c.l.b16 %v525
    %v553 = vunpack.c.l.b16 %v526
    %v554 = vunpack.c.l.b16 %v527
    %v555 = vunpack.c.l.b16 %v528
    %v556 = vunpack.c.l.b16 %v529
    %v557 = vunpack.c.l.b16 %v530
    %v558 = vunpack.c.l.b16 %v531
    %v559 = vunpack.c.l.b16 %v532
    %v560 = vunpack.c.l.b16 %v533
    %v561 = vunpack.c.l.b16 %v534
    %v562 = vpack.c.b16 %v553, %v552
    %v563 = vpack.c.b16 %v555, %v554
    %v564 = vpack.c.b16 %v557, %v556
    %v565 = vpack.c.b16 %v559, %v558
    %v566 = vpack.c.b16 %v561, %v560
    %vm571 = vcmask 613376
    %v573 = vsel %vm571, %v524, 0
    %vm575 = vcmask 1044480
    %vm576 = vcmask 1045504
    %v577 = vsel %vm575, 4294967295, 65535
    %v578 = vsel %vm576, %v577, 0
    %v580 = vand.u32 %v566, %v578
    %582 = vmatprep.subr.bf16.mxu0 0
    %583 = vmatpush1.bf16.msra.mxu0 %v562
    %584 = vmatprep.subr.bf16.mxu0 0
    %585 = vmatpush1.bf16.msra.mxu0 %v563
    %586 = vmatprep.subr.bf16.mxu0 0
    %587 = vmatpush1.bf16.msra.mxu0 %v564
    %588 = vmatprep.subr.bf16.mxu0 0
    %589 = vmatpush1.bf16.msra.mxu0 %v565
    %590 = vmatprep.subr.bf16.mxu0 0
    %591 = vmatpush1.bf16.msra.mxu0 %v580
    %592 = vmatprep.subr.bf16.mxu0 0
    %593 = vmatpush1.bf16.msra.mxu0 0
    %594 = vmatprep.subr.bf16.mxu0 0
    %595 = vmatpush1.bf16.msra.mxu0 0
    %596 = vmatprep.subr.bf16.mxu0 0
    %597 = vmatpush1.bf16.msra.mxu0 0
    %598 = vmatprep.subr.bf16.mxu0 0
    %599 = vmatpush1.bf16.msra.mxu0 0
    %600 = vmatprep.subr.bf16.mxu0 0
    %601 = vmatpush1.bf16.msra.mxu0 0
    %602 = vmatprep.subr.bf16.mxu0 0
    %603 = vmatpush1.bf16.msra.mxu0 0
    %604 = vmatprep.subr.bf16.mxu0 0
    %605 = vmatpush1.bf16.msra.mxu0 0
    %606 = vmatprep.subr.bf16.mxu0 0
    %607 = vmatpush1.bf16.msra.mxu0 0
    %608 = vmatprep.subr.bf16.mxu0 0
    %609 = vmatpush1.bf16.msra.mxu0 0
    %610 = vmatprep.subr.bf16.mxu0 0
    %611 = vmatpush1.bf16.msra.mxu0 0
    %612 = vmatprep.subr.bf16.mxu0 0
    %613 = vmatpush1.bf16.msra.mxu0 0
    %614 = vmatprep.mubr.bf16.mxu0 0
    %615 = vmatmul.mubr.bf16.gmra.mrb[0].mxu0 %v573
    %v616 = vpop.f32.mrb[0].mxu0
    %v617 = vadd.f32 %v540, %v616
    %v618 = vpop.f32.mrb[0].mxu0
    %v619 = vpop.f32.mrb[0].mxu0
    %v620 = vpop.f32.mrb[0].mxu0
    %621 = vdwg.mxu0
    %v622 = vmax.f32 %v617, 0.0
    %v623 = vld [vmem:[%s7] sm:$0x1]
    %v624 = vpack.c.bf16 %v622, %v622
    %v625 = vld [vmem:[#allocation2] sm:$0x1]
    %627 = vset.pattern.permute.xlu0 0
    %628 = vperm.xlu0 %627, %v625
    %v629 = vpop.permute.xlu0 %628
    %v631 = vlaneseq
    %v632 = vshrl.u32 %v631, 7
    %v633 = vsub.s32 0, %v632
    %v634 = vrot.slane %v629, %v633
    %vm635 = vcmask 162816
    %v637 = vsel %vm635, %v623, 0
    %v640 = vsel %vm635, %v624, 0
    %642 = vmatprep.subr.bf16.mxu0 0
    %643 = vmatpush1.bf16.xpose.msra.mxu0 %v640
    %644 = vmatprep.subr.bf16.mxu0 0
    %645 = vmatpush1.bf16.xpose.msra.mxu0 0
    %646 = vmatprep.subr.bf16.mxu0 0
    %647 = vmatpush1.bf16.xpose.msra.mxu0 0
    %648 = vmatprep.subr.bf16.mxu0 0
    %649 = vmatpush1.bf16.xpose.msra.mxu0 0
    %650 = vmatprep.subr.bf16.mxu0 0
    %651 = vmatpush1.bf16.xpose.msra.mxu0 0
    %652 = vmatprep.subr.bf16.mxu0 0
    %653 = vmatpush1.bf16.xpose.msra.mxu0 0
    %654 = vmatprep.subr.bf16.mxu0 0
    %655 = vmatpush1.bf16.xpose.msra.mxu0 0
    %656 = vmatprep.subr.bf16.mxu0 0
    %657 = vmatpush1.bf16.xpose.msra.mxu0 0
    %658 = vmatprep.subr.bf16.mxu0 0
    %659 = vmatpush1.bf16.xpose.msra.mxu0 0
    %660 = vmatprep.subr.bf16.mxu0 0
    %661 = vmatpush1.bf16.xpose.msra.mxu0 0
    %662 = vmatprep.subr.bf16.mxu0 0
    %663 = vmatpush1.bf16.xpose.msra.mxu0 0
    %664 = vmatprep.subr.bf16.mxu0 0
    %665 = vmatpush1.bf16.xpose.msra.mxu0 0
    %666 = vmatprep.subr.bf16.mxu0 0
    %667 = vmatpush1.bf16.xpose.msra.mxu0 0
    %668 = vmatprep.subr.bf16.mxu0 0
    %669 = vmatpush1.bf16.xpose.msra.mxu0 0
    %670 = vmatprep.subr.bf16.mxu0 0
    %671 = vmatpush1.bf16.xpose.msra.mxu0 0
    %672 = vmatprep.subr.bf16.mxu0 0
    %673 = vmatpush1.bf16.xpose.msra.mxu0 0
    %674 = vmatprep.mubr.bf16.mxu0 0
    %675 = vmatmul.mubr.bf16.gmra.mrb[0].mxu0 %v637
    %v676 = vpop.f32.mrb[0].mxu0
    %v677 = vadd.f32 %v634, %v676
    %v678 = vpop.f32.mrb[0].mxu0
    %v679 = vpop.f32.mrb[0].mxu0
    %v680 = vpop.f32.mrb[0].mxu0
    %681 = vdwg.mxu0
    %vm682 = vcmask 57344
    %683 = vst.msk [vmem:[#allocation3] sm:$0x1] %vm682, %v677
    // Predicated region
    $region38: #{tpu_custom_call.1} parent=1 // pred_check
      _
    $region39: #{tpu_custom_call.1} parent=1 // pred_check_branch
      %685 = sbr.rel (0) target = $region41
    $region40: #{tpu_custom_call.1} parent=1 // pred_region
      %s687 = ssub.s32 16, 16
      %688 = vsyncadd [#allocation4], %s687
      %s690 = sshll.u32 [#allocation3], 4
      %s691 = int_to_ptr.vmem [resolvable:$true] %s690
      %693 = dma.vmem_to_hbm [thread:$0]  %s691, 16, %s9, [#allocation4]
    $region41: #{tpu_custom_call.1} parent=1 // pred_fallthru
      _
    // Predicated region
    $region42: #{tpu_custom_call.1} parent=1 // pred_check
      _
    $region43: #{tpu_custom_call.1} parent=1 // pred_check_branch
      %695 = sbr.rel (0) target = $region45
    $region44: #{tpu_custom_call.1} parent=1 // pred_region
      %696 = dma.done [#allocation4], 16
    $region45: #{tpu_custom_call.1} parent=1 // pred_fallthru
      _
    %697 = vsyncpa [#allocation4], 1

</llo_original>
